<compile_context>
chip_gen: v7x
topology: tpu7x:2x2x1
jax: 0.10.0
libtpu: 0.0.40
codegen_flags: <defaults>
</compile_context>

<pallas_src>
import functools
import math

import jax
import jax.numpy as jnp
from jax.experimental import pallas as pl
from jax.experimental.pallas import tpu as pltpu

# ---- Model hyper-parameters (small stand-ins; ViT-base values in parens) ----
IMG = 32            # (224)
PATCH = 16          # (16)
CHANS = 3           # (3)
HIDDEN = 32         # (768)
HEADS = 2           # (12)
HEAD_DIM = HIDDEN // HEADS
MLP = 4 * HIDDEN    # (3072)
LAYERS = 2          # (12)
NUM_CLASSES = 10    # (module default 100)
LN_EPS = 1e-12      # HF ViT layer_norm_eps
N_PATCH = (IMG // PATCH) ** 2
SEQ = N_PATCH + 1   # +1 CLS token
PFLAT = CHANS * PATCH * PATCH   # flattened patch length
NCLS_PAD = 128      # lane-dense classifier output width (sliced to NUM_CLASSES)

assert HEADS * HEAD_DIM == HIDDEN


# --------------------------- Fused Pallas kernel -----------------------------
def _vit_fused_kernel(patches_ref, patch_w_ref, cls_bias_ref, patch_bias_ref,
                      ln1_g_ref, ln1_b_ref, wqkv_ref, bqkv_ref, wo_ref, bo_ref,
                      ln2_g_ref, ln2_b_ref, w1_ref, b1_ref, w2_ref, b2_ref,
                      lnf_g_ref, lnf_b_ref, head_w_ref, head_b_ref,
                      out_ref, slab_ref, *, bt):
    """Processes `bt` images per grid step as one (bt*SEQ, ...) token slab.

    Slab row layout: rows [0, bt)        -> CLS token of image b (row b)
                     rows [bt, bt*SEQ)   -> patches, image-major (N_PATCH rows/img)
    """
    f32, bf16 = jnp.float32, jnp.bfloat16
    scale = 1.0 / math.sqrt(HEAD_DIM)
    m_rows = bt * SEQ

    def ln(x, g, b):
        # LayerNorm statistics / affine kept in f32 (eps=1e-12 is meaningless in bf16).
        mu = jnp.mean(x, axis=-1, keepdims=True)
        var = jnp.mean(jnp.square(x - mu), axis=-1, keepdims=True)
        return (x - mu) * jax.lax.rsqrt(var + LN_EPS) * g + b

    def mm(a, w):
        # bf16 MXU inputs, f32 accumulation.
        return jnp.dot(a.astype(bf16), w.astype(bf16), preferred_element_type=f32)

    # ---- patch embedding (CLS rows synthesized in-kernel; no zero-row matmul) ----
    slab_ref[pl.ds(0, bt), :] = jnp.broadcast_to(cls_bias_ref[...], (bt, HIDDEN))
    slab_ref[pl.ds(bt, bt * N_PATCH), :] = (
        mm(patches_ref[...], patch_w_ref[...]) + patch_bias_ref[...])
    h = slab_ref[...]                                     # (m_rows, HIDDEN) f32

    # ---- block-diagonal (per-image) attention mask, shared by all layers/heads ----
    ri = jax.lax.broadcasted_iota(jnp.int32, (m_rows, m_rows), 0).astype(f32)
    ci = jax.lax.broadcasted_iota(jnp.int32, (m_rows, m_rows), 1).astype(f32)

    def img_id(t):      # CLS row i -> image i ; patch row i -> (i - bt) // N_PATCH
        return jnp.where(t < bt, t, jnp.floor((t - bt) * (1.0 / N_PATCH)))

    attn_mask = jnp.where(img_id(ri) == img_id(ci), 0.0, -1e30)

    # ---- encoder blocks (statically unrolled: LAYERS=2, HEADS=2 at this scale;
    #      switch to fori_loop / a layer grid axis when scaled up) --------------
    for li in range(LAYERS):
        # pre-LN multi-head self-attention over the whole slab (masked block-diag).
        xln = ln(h, ln1_g_ref[li], ln1_b_ref[li])
        qkv = mm(xln, wqkv_ref[li]) + bqkv_ref[li]        # (m_rows, 3*HIDDEN)
        for hd in range(HEADS):
            lo = hd * HEAD_DIM
            q = qkv[:, lo:lo + HEAD_DIM]
            k = qkv[:, HIDDEN + lo:HIDDEN + lo + HEAD_DIM]
            v = qkv[:, 2 * HIDDEN + lo:2 * HIDDEN + lo + HEAD_DIM]
            # scores = q @ k^T over the whole slab; cross-image entries masked off.
            s = jax.lax.dot_general(q.astype(bf16), k.astype(bf16),
                                    (((1,), (1,)), ((), ())),
                                    preferred_element_type=f32) * scale + attn_mask
            mrow = jnp.max(s, axis=-1, keepdims=True)
            e = jnp.exp(s - mrow)
            inv = pl.reciprocal(jnp.sum(e, axis=-1, keepdims=True), approx=True)
            # per-head output written at static lane offsets (no concatenate relayout)
            slab_ref[:, lo:lo + HEAD_DIM] = jnp.dot(
                (e * inv).astype(bf16), v.astype(bf16), preferred_element_type=f32)
        h = h + (mm(slab_ref[...], wo_ref[li]) + bo_ref[li])

        # pre-LN MLP (GELU)
        xln2 = ln(h, ln2_g_ref[li], ln2_b_ref[li])
        mid = mm(xln2, w1_ref[li]) + b1_ref[li]
        # TODO(synk): HF ViT uses exact erf-GELU; tanh approximation used here.
        mid = jax.nn.gelu(mid, approximate=True)
        h = h + (mm(mid, w2_ref[li]) + b2_ref[li])

    # ---- final LN -> CLS rows -> classifier head (lane-padded output) --------
    hf = ln(h, lnf_g_ref[...], lnf_b_ref[...])
    cls_tok = hf[0:bt, :]                                 # (bt, HIDDEN)
    out_ref[...] = mm(cls_tok, head_w_ref[...]) + head_b_ref[...]   # (bt, NCLS_PAD)


# ------------------------- Parameter initialization --------------------------
def init_params(key):
    # TODO(synk): no pretrained-checkpoint load; deterministic random init.
    ks = jax.random.split(key, 4 + LAYERS)

    def nrm(k, shape, scale=0.02):
        return scale * jax.random.normal(k, shape, dtype=jnp.float32)

    p = {
        # conv patch-embed weight (D, C, ps, ps) flattened to (C*ps*ps, D)
        "patch_w": nrm(ks[0], (PFLAT, HIDDEN)),
        "patch_b": jnp.zeros((HIDDEN,), jnp.float32),
        "cls": nrm(ks[1], (1, 1, HIDDEN)),
        "pos": nrm(ks[2], (1, SEQ, HIDDEN)),
        "ln_f_g": jnp.ones((HIDDEN,), jnp.float32),
        "ln_f_b": jnp.zeros((HIDDEN,), jnp.float32),
        # self.last_layer = nn.Linear(768 -> num_classes)  (scaled down)
        "head_w": nrm(ks[3], (HIDDEN, NUM_CLASSES)),
        "head_b": jnp.zeros((NUM_CLASSES,), jnp.float32),
        "layers": [],
    }
    for li in range(LAYERS):
        lk = jax.random.split(ks[4 + li], 6)
        p["layers"].append(dict(
            ln1_g=jnp.ones((HIDDEN,), jnp.float32),
            ln1_b=jnp.zeros((HIDDEN,), jnp.float32),
            wq=nrm(lk[0], (HIDDEN, HIDDEN)), bq=jnp.zeros((HIDDEN,), jnp.float32),
            wk=nrm(lk[1], (HIDDEN, HIDDEN)), bk=jnp.zeros((HIDDEN,), jnp.float32),
            wv=nrm(lk[2], (HIDDEN, HIDDEN)), bv=jnp.zeros((HIDDEN,), jnp.float32),
            wo=nrm(lk[3], (HIDDEN, HIDDEN)), bo=jnp.zeros((HIDDEN,), jnp.float32),
            ln2_g=jnp.ones((HIDDEN,), jnp.float32),
            ln2_b=jnp.zeros((HIDDEN,), jnp.float32),
            w1=nrm(lk[4], (HIDDEN, MLP)), b1=jnp.zeros((MLP,), jnp.float32),
            w2=nrm(lk[5], (MLP, HIDDEN)), b2=jnp.zeros((HIDDEN,), jnp.float32),
        ))
    return p


def pack_params(p):
    """Fold/stack module-style params into the fused-kernel layout (one-time)."""
    f32, bf16 = jnp.float32, jnp.bfloat16

    # Fold ViTFeatureExtractor normalization (x/255 - 0.5)/0.5 == x/127.5 - 1
    # into the patch-embed weights/bias (removes a full-image HBM pass).
    patch_w_f = p["patch_w"] / 127.5
    patch_b_f = p["patch_b"] - jnp.sum(p["patch_w"], axis=0)

    pos = p["pos"][0]                 # (SEQ, HIDDEN)
    cls = p["cls"][0, 0]              # (HIDDEN,)
    emb_bias = jnp.concatenate(
        [(cls + pos[0])[None, :],                        # CLS row: cls + pos[0]
         patch_b_f[None, :] + pos[1:]], axis=0)          # patch rows: bias + pos

    def stack_vec(name):              # (L, 1, dim) so ref[li] broadcasts cleanly
        return jnp.stack([p["layers"][l][name][None, :] for l in range(LAYERS)], axis=0)

    def stack_mat(name):
        return jnp.stack([p["layers"][l][name] for l in range(LAYERS)], axis=0)

    wqkv = jnp.stack(
        [jnp.concatenate([p["layers"][l]["wq"], p["layers"][l]["wk"],
                          p["layers"][l]["wv"]], axis=1) for l in range(LAYERS)], axis=0)
    bqkv = jnp.stack(
        [jnp.concatenate([p["layers"][l]["bq"], p["layers"][l]["bk"],
                          p["layers"][l]["bv"]])[None, :] for l in range(LAYERS)], axis=0)

    head_w_pad = jnp.zeros((HIDDEN, NCLS_PAD), f32).at[:, :NUM_CLASSES].set(p["head_w"])
    head_b_pad = jnp.zeros((1, NCLS_PAD), f32).at[:, :NUM_CLASSES].set(p["head_b"])

    return dict(
        patch_w=patch_w_f.astype(bf16),
        emb_bias=emb_bias.astype(f32),
        ln1_g=stack_vec("ln1_g"), ln1_b=stack_vec("ln1_b"),
        wqkv=wqkv.astype(bf16), bqkv=bqkv.astype(f32),
        wo=stack_mat("wo").astype(bf16), bo=stack_vec("bo"),
        ln2_g=stack_vec("ln2_g"), ln2_b=stack_vec("ln2_b"),
        w1=stack_mat("w1").astype(bf16), b1=stack_vec("b1"),
        w2=stack_mat("w2").astype(bf16), b2=stack_vec("b2"),
        ln_f_g=p["ln_f_g"][None, :], ln_f_b=p["ln_f_b"][None, :],
        head_w=head_w_pad.astype(bf16), head_b=head_b_pad,
    )


# ------------------------------ Forward pass ---------------------------------
def _full_spec(shape):
    nd = len(shape)
    return pl.BlockSpec(shape, lambda g, _nd=nd: (0,) * _nd)


def vit_forward(x, w, *, b_tile=None):
    """x: (B, CHANS, IMG, IMG) float32 raw pixels in [0, 255]."""
    B = x.shape[0]
    nh = nw = IMG // PATCH

    # Images per grid step.  Small batches: the whole batch is one step (M=B*SEQ
    # rows).  Larger batches: cap at 24 images/step (M=120 rows, 8-aligned, near
    # a 128-row MXU tile); multiple "parallel" steps let v7x's 2 TCs share work.
    if b_tile is None:
        b_tile = B if B <= 8 else min(((B + 7) // 8) * 8, 24)
    b_pad = ((B + b_tile - 1) // b_tile) * b_tile
    grid = (b_pad // b_tile,)

    # --- conv(k=stride=PATCH) == patchify + matmul.  The patchify transpose and
    # the bf16 cast fuse into one XLA op (single HBM pass); no CLS-row concat —
    # the kernel synthesizes CLS rows from the folded cls+pos bias.
    # TODO(synk): real ViTFeatureExtractor also bilinearly resizes to 224x224;
    # inputs here are already at the (scaled-down) model image size.
    patches = x.reshape(B, CHANS, nh, PATCH, nw, PATCH)
    patches = patches.transpose(0, 2, 4, 1, 3, 5).reshape(B, N_PATCH, PFLAT)
    patches = patches.astype(jnp.bfloat16)                # halves per-step DMA bytes
    if b_pad != B:
        patches = jnp.concatenate(
            [patches, jnp.zeros((b_pad - B, N_PATCH, PFLAT), jnp.bfloat16)], axis=0)
    patches = patches.reshape(b_pad * N_PATCH, PFLAT)

    cls_bias = w["emb_bias"][0:1]                            # (1, HIDDEN)
    patch_bias = jnp.tile(w["emb_bias"][1:], (b_tile, 1))    # (b_tile*N_PATCH, HIDDEN)

    # NOTE: weight specs use constant index maps; at this toy size the default
    # double-buffering only costs ~50 KB VMEM, so pl.Buffered(1) is omitted.
    in_specs = [
        pl.BlockSpec((b_tile * N_PATCH, PFLAT), lambda g: (g, 0)),  # patches (streamed)
        _full_spec((PFLAT, HIDDEN)),                          # patch_w (norm folded)
        _full_spec((1, HIDDEN)),                              # cls_bias (cls + pos[0])
        _full_spec((b_tile * N_PATCH, HIDDEN)),               # patch_bias (bias + pos)
        _full_spec((LAYERS, 1, HIDDEN)),                      # ln1_g
        _full_spec((LAYERS, 1, HIDDEN)),                      # ln1_b
        _full_spec((LAYERS, HIDDEN, 3 * HIDDEN)),             # wqkv
        _full_spec((LAYERS, 1, 3 * HIDDEN)),                  # bqkv
        _full_spec((LAYERS, HIDDEN, HIDDEN)),                 # wo
        _full_spec((LAYERS, 1, HIDDEN)),                      # bo
        _full_spec((LAYERS, 1, HIDDEN)),                      # ln2_g
        _full_spec((LAYERS, 1, HIDDEN)),                      # ln2_b
        _full_spec((LAYERS, HIDDEN, MLP)),                    # w1
        _full_spec((LAYERS, 1, MLP)),                         # b1
        _full_spec((LAYERS, MLP, HIDDEN)),                    # w2
        _full_spec((LAYERS, 1, HIDDEN)),                      # b2
        _full_spec((1, HIDDEN)),                              # ln_f_g
        _full_spec((1, HIDDEN)),                              # ln_f_b
        _full_spec((HIDDEN, NCLS_PAD)),                       # head_w (padded)
        _full_spec((1, NCLS_PAD)),                            # head_b (padded)
    ]

    logits_pad = pl.pallas_call(
        functools.partial(_vit_fused_kernel, bt=b_tile),
        out_shape=jax.ShapeDtypeStruct((b_pad, NCLS_PAD), jnp.float32),
        grid=grid,
        in_specs=in_specs,
        out_specs=pl.BlockSpec((b_tile, NCLS_PAD), lambda g: (g, 0)),
        scratch_shapes=[pltpu.VMEM((b_tile * SEQ, HIDDEN), jnp.float32)],
        compiler_params=pltpu.CompilerParams(
            dimension_semantics=("parallel",)),   # v7x: shard batch tiles across 2 TCs
    )(patches, w["patch_w"], cls_bias, patch_bias,
      w["ln1_g"], w["ln1_b"], w["wqkv"], w["bqkv"], w["wo"], w["bo"],
      w["ln2_g"], w["ln2_b"], w["w1"], w["b1"], w["w2"], w["b2"],
      w["ln_f_g"], w["ln_f_b"], w["head_w"], w["head_b"])

    return logits_pad[:B, :NUM_CLASSES]


if __name__ == "__main__":
    key = jax.random.PRNGKey(0)
    kx, kp = jax.random.split(key)
    # Raw image batch, NCHW, pixel values in [0, 255] like the PyTorch module.
    x = jax.random.uniform(kx, (2, CHANS, IMG, IMG), jnp.float32, 0.0, 255.0)
    params = init_params(kp)
    packed = pack_params(params)   # one-time fold/stack of weights

    logits = jax.jit(vit_forward)(x, packed)
    logits = jax.block_until_ready(logits)
    assert logits.shape == (2, NUM_CLASSES)
    assert logits.dtype == jnp.float32
    print("KERNEL_OK")
</pallas_src>

<mosaic_0001>
module attributes {stable_mosaic.version = 11 : i64} {
  func.func @_vit_fused_kernel(%arg0: i32, %arg1: memref<8x768xbf16, #tpu.memory_space<vmem>>, %arg2: memref<768x32xbf16, #tpu.memory_space<vmem>>, %arg3: memref<1x32xf32, #tpu.memory_space<vmem>>, %arg4: memref<8x32xf32, #tpu.memory_space<vmem>>, %arg5: memref<2x1x32xf32, #tpu.memory_space<vmem>>, %arg6: memref<2x1x32xf32, #tpu.memory_space<vmem>>, %arg7: memref<2x32x96xbf16, #tpu.memory_space<vmem>>, %arg8: memref<2x1x96xf32, #tpu.memory_space<vmem>>, %arg9: memref<2x32x32xbf16, #tpu.memory_space<vmem>>, %arg10: memref<2x1x32xf32, #tpu.memory_space<vmem>>, %arg11: memref<2x1x32xf32, #tpu.memory_space<vmem>>, %arg12: memref<2x1x32xf32, #tpu.memory_space<vmem>>, %arg13: memref<2x32x128xbf16, #tpu.memory_space<vmem>>, %arg14: memref<2x1x128xf32, #tpu.memory_space<vmem>>, %arg15: memref<2x128x32xbf16, #tpu.memory_space<vmem>>, %arg16: memref<2x1x32xf32, #tpu.memory_space<vmem>>, %arg17: memref<1x32xf32, #tpu.memory_space<vmem>>, %arg18: memref<1x32xf32, #tpu.memory_space<vmem>>, %arg19: memref<32x128xbf16, #tpu.memory_space<vmem>>, %arg20: memref<1x128xf32, #tpu.memory_space<vmem>>, %arg21: memref<2x128xf32, #tpu.memory_space<vmem>>, %arg22: memref<10x32xf32, #tpu.memory_space<vmem>>) attributes {dimension_semantics = [#tpu.dimension_semantics<parallel>], iteration_bounds = array<i64: 1>, scalar_prefetch = 0 : i64, scratch_operands = 1 : i64, tpu.core_type = #tpu.core_type<tc>, window_params = [{transform_indices = @transform_0, window_bounds = array<i64: 8, 768>}, {pipeline_mode = #tpu.pipeline_mode<synchronous>, transform_indices = @transform_1, window_bounds = array<i64: 768, 32>}, {pipeline_mode = #tpu.pipeline_mode<synchronous>, transform_indices = @transform_2, window_bounds = array<i64: 1, 32>}, {pipeline_mode = #tpu.pipeline_mode<synchronous>, transform_indices = @transform_3, window_bounds = array<i64: 8, 32>}, {pipeline_mode = #tpu.pipeline_mode<synchronous>, transform_indices = @transform_4, window_bounds = array<i64: 2, 1, 32>}, {pipeline_mode = #tpu.pipeline_mode<synchronous>, transform_indices = @transform_5, window_bounds = array<i64: 2, 1, 32>}, {pipeline_mode = #tpu.pipeline_mode<synchronous>, transform_indices = @transform_6, window_bounds = array<i64: 2, 32, 96>}, {pipeline_mode = #tpu.pipeline_mode<synchronous>, transform_indices = @transform_7, window_bounds = array<i64: 2, 1, 96>}, {pipeline_mode = #tpu.pipeline_mode<synchronous>, transform_indices = @transform_8, window_bounds = array<i64: 2, 32, 32>}, {pipeline_mode = #tpu.pipeline_mode<synchronous>, transform_indices = @transform_9, window_bounds = array<i64: 2, 1, 32>}, {pipeline_mode = #tpu.pipeline_mode<synchronous>, transform_indices = @transform_10, window_bounds = array<i64: 2, 1, 32>}, {pipeline_mode = #tpu.pipeline_mode<synchronous>, transform_indices = @transform_11, window_bounds = array<i64: 2, 1, 32>}, {pipeline_mode = #tpu.pipeline_mode<synchronous>, transform_indices = @transform_12, window_bounds = array<i64: 2, 32, 128>}, {pipeline_mode = #tpu.pipeline_mode<synchronous>, transform_indices = @transform_13, window_bounds = array<i64: 2, 1, 128>}, {pipeline_mode = #tpu.pipeline_mode<synchronous>, transform_indices = @transform_14, window_bounds = array<i64: 2, 128, 32>}, {pipeline_mode = #tpu.pipeline_mode<synchronous>, transform_indices = @transform_15, window_bounds = array<i64: 2, 1, 32>}, {pipeline_mode = #tpu.pipeline_mode<synchronous>, transform_indices = @transform_16, window_bounds = array<i64: 1, 32>}, {pipeline_mode = #tpu.pipeline_mode<synchronous>, transform_indices = @transform_17, window_bounds = array<i64: 1, 32>}, {pipeline_mode = #tpu.pipeline_mode<synchronous>, transform_indices = @transform_18, window_bounds = array<i64: 32, 128>}, {pipeline_mode = #tpu.pipeline_mode<synchronous>, transform_indices = @transform_19, window_bounds = array<i64: 1, 128>}, {transform_indices = @transform_20, window_bounds = array<i64: 2, 128>}]} {
    %c0 = arith.constant 0 : index
    %c0_0 = arith.constant 0 : index
    %0 = vector.load %arg3[%c0, %c0_0] : memref<1x32xf32, #tpu.memory_space<vmem>>, vector<1x32xf32>
    %1 = vector.shape_cast %0 : vector<1x32xf32> to vector<1x32xf32>
    %2 = vector.broadcast %1 : vector<1x32xf32> to vector<2x32xf32>
    %c0_1 = arith.constant 0 : index
    %c0_2 = arith.constant 0 : index
    %3 = vector.load %arg22[%c0_1, %c0_2] : memref<10x32xf32, #tpu.memory_space<vmem>>, vector<2x32xf32>
    tpu.vector_store %arg22[%c0_1, %c0_2], %2 {strides = array<i32>} : memref<10x32xf32, #tpu.memory_space<vmem>>, vector<2x32xf32>,
    %c0_3 = arith.constant 0 : index
    %c0_4 = arith.constant 0 : index
    %4 = vector.load %arg1[%c0_3, %c0_4] : memref<8x768xbf16, #tpu.memory_space<vmem>>, vector<8x768xbf16>
    %c0_5 = arith.constant 0 : index
    %c0_6 = arith.constant 0 : index
    %5 = vector.load %arg2[%c0_5, %c0_6] : memref<768x32xbf16, #tpu.memory_space<vmem>>, vector<768x32xbf16>
    %cst = arith.constant dense<0.000000e+00> : vector<8x32xf32>
    %6 = tpu.matmul %4, %5, %cst {dimension_numbers = #tpu.dot_dimension_numbers<[1], [0], [0], [1], [0, 0, 1, 1], [], []>} : vector<8x768xbf16>, vector<768x32xbf16>, vector<8x32xf32> -> vector<8x32xf32>
    %c0_7 = arith.constant 0 : index
    %c0_8 = arith.constant 0 : index
    %7 = vector.load %arg4[%c0_7, %c0_8] : memref<8x32xf32, #tpu.memory_space<vmem>>, vector<8x32xf32>
    %8 = arith.addf %6, %7 : vector<8x32xf32>
    %c2 = arith.constant 2 : index
    %c0_9 = arith.constant 0 : index
    %9 = vector.load %arg22[%c2, %c0_9] : memref<10x32xf32, #tpu.memory_space<vmem>>, vector<8x32xf32>
    tpu.vector_store %arg22[%c2, %c0_9], %8 {strides = array<i32>} : memref<10x32xf32, #tpu.memory_space<vmem>>, vector<8x32xf32>,
    %c0_10 = arith.constant 0 : index
    %c0_11 = arith.constant 0 : index
    %10 = vector.load %arg22[%c0_10, %c0_11] : memref<10x32xf32, #tpu.memory_space<vmem>>, vector<10x32xf32>
    %11 = tpu.iota {dimensions = array<i32: 0>} : vector<10x10xi32>
    %12 = arith.sitofp %11 : vector<10x10xi32> to vector<10x10xf32>
    %13 = tpu.iota {dimensions = array<i32: 1>} : vector<10x10xi32>
    %14 = arith.sitofp %13 : vector<10x10xi32> to vector<10x10xf32>
    %cst_12 = arith.constant 2.000000e+00 : f32
    %15 = vector.broadcast %cst_12 : f32 to vector<10x10xf32>
    %16 = arith.cmpf olt, %12, %15 : vector<10x10xf32>
    %cst_13 = arith.constant 2.000000e+00 : f32
    %17 = vector.broadcast %cst_13 : f32 to vector<10x10xf32>
    %18 = arith.subf %12, %17 : vector<10x10xf32>
    %cst_14 = arith.constant 2.500000e-01 : f32
    %19 = vector.broadcast %cst_14 : f32 to vector<10x10xf32>
    %20 = arith.mulf %18, %19 : vector<10x10xf32>
    %21 = math.floor %20 : vector<10x10xf32>
    %22 = arith.select %16, %12, %21 : vector<10x10xi1>, vector<10x10xf32>
    %cst_15 = arith.constant 2.000000e+00 : f32
    %23 = vector.broadcast %cst_15 : f32 to vector<10x10xf32>
    %24 = arith.cmpf olt, %14, %23 : vector<10x10xf32>
    %cst_16 = arith.constant 2.000000e+00 : f32
    %25 = vector.broadcast %cst_16 : f32 to vector<10x10xf32>
    %26 = arith.subf %14, %25 : vector<10x10xf32>
    %cst_17 = arith.constant 2.500000e-01 : f32
    %27 = vector.broadcast %cst_17 : f32 to vector<10x10xf32>
    %28 = arith.mulf %26, %27 : vector<10x10xf32>
    %29 = math.floor %28 : vector<10x10xf32>
    %30 = arith.select %24, %14, %29 : vector<10x10xi1>, vector<10x10xf32>
    %31 = arith.cmpf oeq, %22, %30 : vector<10x10xf32>
    %cst_18 = arith.constant 0.000000e+00 : f32
    %cst_19 = arith.constant -1.000000e+30 : f32
    %32 = vector.broadcast %cst_18 : f32 to vector<10x10xf32>
    %33 = vector.broadcast %cst_19 : f32 to vector<10x10xf32>
    %34 = arith.select %31, %32, %33 : vector<10x10xi1>, vector<10x10xf32>
    %c0_20 = arith.constant 0 : index
    %c0_21 = arith.constant 0 : index
    %c0_22 = arith.constant 0 : index
    %35 = vector.load %arg5[%c0_20, %c0_21, %c0_22] : memref<2x1x32xf32, #tpu.memory_space<vmem>>, vector<1x1x32xf32>
    %36 = vector.shape_cast %35 : vector<1x1x32xf32> to vector<1x32xf32>
    %c0_23 = arith.constant 0 : index
    %c0_24 = arith.constant 0 : index
    %c0_25 = arith.constant 0 : index
    %37 = vector.load %arg6[%c0_23, %c0_24, %c0_25] : memref<2x1x32xf32, #tpu.memory_space<vmem>>, vector<1x1x32xf32>
    %38 = vector.shape_cast %37 : vector<1x1x32xf32> to vector<1x32xf32>
    %cst_26 = arith.constant dense<0.000000e+00> : vector<10xf32>
    %39 = vector.multi_reduction <add>, %10, %cst_26 [1] : vector<10x32xf32> to vector<10xf32>
    %40 = vector.shape_cast %39 : vector<10xf32> to vector<10x1xf32>
    %cst_27 = arith.constant 3.200000e+01 : f32
    %41 = vector.broadcast %cst_27 : f32 to vector<10x1xf32>
    %42 = arith.divf %40, %41 : vector<10x1xf32>
    %43 = vector.broadcast %42 : vector<10x1xf32> to vector<10x32xf32>
    %44 = arith.subf %10, %43 : vector<10x32xf32>
    %45 = arith.mulf %44, %44 : vector<10x32xf32>
    %cst_28 = arith.constant dense<0.000000e+00> : vector<10xf32>
    %46 = vector.multi_reduction <add>, %45, %cst_28 [1] : vector<10x32xf32> to vector<10xf32>
    %47 = vector.shape_cast %46 : vector<10xf32> to vector<10x1xf32>
    %cst_29 = arith.constant 3.200000e+01 : f32
    %48 = vector.broadcast %cst_29 : f32 to vector<10x1xf32>
    %49 = arith.divf %47, %48 : vector<10x1xf32>
    %50 = vector.broadcast %42 : vector<10x1xf32> to vector<10x32xf32>
    %51 = arith.subf %10, %50 : vector<10x32xf32>
    %cst_30 = arith.constant 9.99999996E-13 : f32
    %52 = vector.broadcast %cst_30 : f32 to vector<10x1xf32>
    %53 = arith.addf %49, %52 : vector<10x1xf32>
    %54 = math.rsqrt %53 : vector<10x1xf32>
    %55 = vector.broadcast %54 : vector<10x1xf32> to vector<10x32xf32>
    %56 = arith.mulf %51, %55 : vector<10x32xf32>
    %57 = vector.broadcast %36 : vector<1x32xf32> to vector<10x32xf32>
    %58 = arith.mulf %56, %57 : vector<10x32xf32>
    %59 = vector.broadcast %38 : vector<1x32xf32> to vector<10x32xf32>
    %60 = arith.addf %58, %59 : vector<10x32xf32>
    %c0_31 = arith.constant 0 : index
    %c0_32 = arith.constant 0 : index
    %c0_33 = arith.constant 0 : index
    %61 = vector.load %arg7[%c0_31, %c0_32, %c0_33] : memref<2x32x96xbf16, #tpu.memory_space<vmem>>, vector<1x32x96xbf16>
    %62 = vector.shape_cast %61 : vector<1x32x96xbf16> to vector<32x96xbf16>
    %63 = arith.truncf %60 : vector<10x32xf32> to vector<10x32xbf16>
    %cst_34 = arith.constant dense<0.000000e+00> : vector<10x96xf32>
    %64 = tpu.matmul %63, %62, %cst_34 {dimension_numbers = #tpu.dot_dimension_numbers<[1], [0], [0], [1], [0, 0, 1, 1], [], []>} : vector<10x32xbf16>, vector<32x96xbf16>, vector<10x96xf32> -> vector<10x96xf32>
    %c0_35 = arith.constant 0 : index
    %c0_36 = arith.constant 0 : index
    %c0_37 = arith.constant 0 : index
    %65 = vector.load %arg8[%c0_35, %c0_36, %c0_37] : memref<2x1x96xf32, #tpu.memory_space<vmem>>, vector<1x1x96xf32>
    %66 = vector.shape_cast %65 : vector<1x1x96xf32> to vector<1x96xf32>
    %67 = vector.broadcast %66 : vector<1x96xf32> to vector<10x96xf32>
    %68 = arith.addf %64, %67 : vector<10x96xf32>
    %69 = vector.extract_strided_slice %68 {offsets = [0, 0], sizes = [10, 16], strides = [1, 1]} : vector<10x96xf32> to vector<10x16xf32>
    %70 = vector.extract_strided_slice %68 {offsets = [0, 32], sizes = [10, 16], strides = [1, 1]} : vector<10x96xf32> to vector<10x16xf32>
    %71 = vector.extract_strided_slice %68 {offsets = [0, 64], sizes = [10, 16], strides = [1, 1]} : vector<10x96xf32> to vector<10x16xf32>
    %72 = arith.truncf %69 : vector<10x16xf32> to vector<10x16xbf16>
    %73 = arith.truncf %70 : vector<10x16xf32> to vector<10x16xbf16>
    %cst_38 = arith.constant dense<0.000000e+00> : vector<10x10xf32>
    %74 = tpu.matmul %72, %73, %cst_38 {dimension_numbers = #tpu.dot_dimension_numbers<[1], [1], [0], [0], [0, 0, 1, 0], [], []>} : vector<10x16xbf16>, vector<10x16xbf16>, vector<10x10xf32> -> vector<10x10xf32>
    %cst_39 = arith.constant 2.500000e-01 : f32
    %75 = vector.broadcast %cst_39 : f32 to vector<10x10xf32>
    %76 = arith.mulf %74, %75 : vector<10x10xf32>
    %77 = arith.addf %76, %34 : vector<10x10xf32>
    %cst_40 = arith.constant dense<0xFF800000> : vector<10xf32>
    %78 = vector.multi_reduction <maximumf>, %77, %cst_40 [1] : vector<10x10xf32> to vector<10xf32>
    %79 = vector.shape_cast %78 : vector<10xf32> to vector<10x1xf32>
    %80 = vector.broadcast %79 : vector<10x1xf32> to vector<10x10xf32>
    %81 = arith.subf %77, %80 : vector<10x10xf32>
    %82 = math.exp %81 : vector<10x10xf32>
    %cst_41 = arith.constant dense<0.000000e+00> : vector<10xf32>
    %83 = vector.multi_reduction <add>, %82, %cst_41 [1] : vector<10x10xf32> to vector<10xf32>
    %84 = vector.shape_cast %83 : vector<10xf32> to vector<10x1xf32>
    %85 = tpu.reciprocal %84 {approx = true} : vector<10x1xf32> -> vector<10x1xf32>
    %86 = vector.broadcast %85 : vector<10x1xf32> to vector<10x10xf32>
    %87 = arith.mulf %82, %86 : vector<10x10xf32>
    %88 = arith.truncf %87 : vector<10x10xf32> to vector<10x10xbf16>
    %89 = arith.truncf %71 : vector<10x16xf32> to vector<10x16xbf16>
    %cst_42 = arith.constant dense<0.000000e+00> : vector<10x16xf32>
    %90 = tpu.matmul %88, %89, %cst_42 {dimension_numbers = #tpu.dot_dimension_numbers<[1], [0], [0], [1], [0, 0, 1, 1], [], []>} : vector<10x10xbf16>, vector<10x16xbf16>, vector<10x16xf32> -> vector<10x16xf32>
    %c0_43 = arith.constant 0 : index
    %c0_44 = arith.constant 0 : index
    %91 = vector.load %arg22[%c0_43, %c0_44] : memref<10x32xf32, #tpu.memory_space<vmem>>, vector<10x16xf32>
    tpu.vector_store %arg22[%c0_43, %c0_44], %90 {strides = array<i32>} : memref<10x32xf32, #tpu.memory_space<vmem>>, vector<10x16xf32>,
    %92 = vector.extract_strided_slice %68 {offsets = [0, 16], sizes = [10, 16], strides = [1, 1]} : vector<10x96xf32> to vector<10x16xf32>
    %93 = vector.extract_strided_slice %68 {offsets = [0, 48], sizes = [10, 16], strides = [1, 1]} : vector<10x96xf32> to vector<10x16xf32>
    %94 = vector.extract_strided_slice %68 {offsets = [0, 80], sizes = [10, 16], strides = [1, 1]} : vector<10x96xf32> to vector<10x16xf32>
    %95 = arith.truncf %92 : vector<10x16xf32> to vector<10x16xbf16>
    %96 = arith.truncf %93 : vector<10x16xf32> to vector<10x16xbf16>
    %cst_45 = arith.constant dense<0.000000e+00> : vector<10x10xf32>
    %97 = tpu.matmul %95, %96, %cst_45 {dimension_numbers = #tpu.dot_dimension_numbers<[1], [1], [0], [0], [0, 0, 1, 0], [], []>} : vector<10x16xbf16>, vector<10x16xbf16>, vector<10x10xf32> -> vector<10x10xf32>
    %cst_46 = arith.constant 2.500000e-01 : f32
    %98 = vector.broadcast %cst_46 : f32 to vector<10x10xf32>
    %99 = arith.mulf %97, %98 : vector<10x10xf32>
    %100 = arith.addf %99, %34 : vector<10x10xf32>
    %cst_47 = arith.constant dense<0xFF800000> : vector<10xf32>
    %101 = vector.multi_reduction <maximumf>, %100, %cst_47 [1] : vector<10x10xf32> to vector<10xf32>
    %102 = vector.shape_cast %101 : vector<10xf32> to vector<10x1xf32>
    %103 = vector.broadcast %102 : vector<10x1xf32> to vector<10x10xf32>
    %104 = arith.subf %100, %103 : vector<10x10xf32>
    %105 = math.exp %104 : vector<10x10xf32>
    %cst_48 = arith.constant dense<0.000000e+00> : vector<10xf32>
    %106 = vector.multi_reduction <add>, %105, %cst_48 [1] : vector<10x10xf32> to vector<10xf32>
    %107 = vector.shape_cast %106 : vector<10xf32> to vector<10x1xf32>
    %108 = tpu.reciprocal %107 {approx = true} : vector<10x1xf32> -> vector<10x1xf32>
    %109 = vector.broadcast %108 : vector<10x1xf32> to vector<10x10xf32>
    %110 = arith.mulf %105, %109 : vector<10x10xf32>
    %111 = arith.truncf %110 : vector<10x10xf32> to vector<10x10xbf16>
    %112 = arith.truncf %94 : vector<10x16xf32> to vector<10x16xbf16>
    %cst_49 = arith.constant dense<0.000000e+00> : vector<10x16xf32>
    %113 = tpu.matmul %111, %112, %cst_49 {dimension_numbers = #tpu.dot_dimension_numbers<[1], [0], [0], [1], [0, 0, 1, 1], [], []>} : vector<10x10xbf16>, vector<10x16xbf16>, vector<10x16xf32> -> vector<10x16xf32>
    %c0_50 = arith.constant 0 : index
    %c16 = arith.constant 16 : index
    %114 = vector.load %arg22[%c0_50, %c16] : memref<10x32xf32, #tpu.memory_space<vmem>>, vector<10x16xf32>
    tpu.vector_store %arg22[%c0_50, %c16], %113 {strides = array<i32>} : memref<10x32xf32, #tpu.memory_space<vmem>>, vector<10x16xf32>,
    %c0_51 = arith.constant 0 : index
    %c0_52 = arith.constant 0 : index
    %115 = vector.load %arg22[%c0_51, %c0_52] : memref<10x32xf32, #tpu.memory_space<vmem>>, vector<10x32xf32>
    %c0_53 = arith.constant 0 : index
    %c0_54 = arith.constant 0 : index
    %c0_55 = arith.constant 0 : index
    %116 = vector.load %arg9[%c0_53, %c0_54, %c0_55] : memref<2x32x32xbf16, #tpu.memory_space<vmem>>, vector<1x32x32xbf16>
    %117 = vector.shape_cast %116 : vector<1x32x32xbf16> to vector<32x32xbf16>
    %118 = arith.truncf %115 : vector<10x32xf32> to vector<10x32xbf16>
    %cst_56 = arith.constant dense<0.000000e+00> : vector<10x32xf32>
    %119 = tpu.matmul %118, %117, %cst_56 {dimension_numbers = #tpu.dot_dimension_numbers<[1], [0], [0], [1], [0, 0, 1, 1], [], []>} : vector<10x32xbf16>, vector<32x32xbf16>, vector<10x32xf32> -> vector<10x32xf32>
    %c0_57 = arith.constant 0 : index
    %c0_58 = arith.constant 0 : index
    %c0_59 = arith.constant 0 : index
    %120 = vector.load %arg10[%c0_57, %c0_58, %c0_59] : memref<2x1x32xf32, #tpu.memory_space<vmem>>, vector<1x1x32xf32>
    %121 = vector.shape_cast %120 : vector<1x1x32xf32> to vector<1x32xf32>
    %122 = vector.broadcast %121 : vector<1x32xf32> to vector<10x32xf32>
    %123 = arith.addf %119, %122 : vector<10x32xf32>
    %124 = arith.addf %10, %123 : vector<10x32xf32>
    %c0_60 = arith.constant 0 : index
    %c0_61 = arith.constant 0 : index
    %c0_62 = arith.constant 0 : index
    %125 = vector.load %arg11[%c0_60, %c0_61, %c0_62] : memref<2x1x32xf32, #tpu.memory_space<vmem>>, vector<1x1x32xf32>
    %126 = vector.shape_cast %125 : vector<1x1x32xf32> to vector<1x32xf32>
    %c0_63 = arith.constant 0 : index
    %c0_64 = arith.constant 0 : index
    %c0_65 = arith.constant 0 : index
    %127 = vector.load %arg12[%c0_63, %c0_64, %c0_65] : memref<2x1x32xf32, #tpu.memory_space<vmem>>, vector<1x1x32xf32>
    %128 = vector.shape_cast %127 : vector<1x1x32xf32> to vector<1x32xf32>
    %cst_66 = arith.constant dense<0.000000e+00> : vector<10xf32>
    %129 = vector.multi_reduction <add>, %124, %cst_66 [1] : vector<10x32xf32> to vector<10xf32>
    %130 = vector.shape_cast %129 : vector<10xf32> to vector<10x1xf32>
    %cst_67 = arith.constant 3.200000e+01 : f32
    %131 = vector.broadcast %cst_67 : f32 to vector<10x1xf32>
    %132 = arith.divf %130, %131 : vector<10x1xf32>
    %133 = vector.broadcast %132 : vector<10x1xf32> to vector<10x32xf32>
    %134 = arith.subf %124, %133 : vector<10x32xf32>
    %135 = arith.mulf %134, %134 : vector<10x32xf32>
    %cst_68 = arith.constant dense<0.000000e+00> : vector<10xf32>
    %136 = vector.multi_reduction <add>, %135, %cst_68 [1] : vector<10x32xf32> to vector<10xf32>
    %137 = vector.shape_cast %136 : vector<10xf32> to vector<10x1xf32>
    %cst_69 = arith.constant 3.200000e+01 : f32
    %138 = vector.broadcast %cst_69 : f32 to vector<10x1xf32>
    %139 = arith.divf %137, %138 : vector<10x1xf32>
    %140 = vector.broadcast %132 : vector<10x1xf32> to vector<10x32xf32>
    %141 = arith.subf %124, %140 : vector<10x32xf32>
    %cst_70 = arith.constant 9.99999996E-13 : f32
    %142 = vector.broadcast %cst_70 : f32 to vector<10x1xf32>
    %143 = arith.addf %139, %142 : vector<10x1xf32>
    %144 = math.rsqrt %143 : vector<10x1xf32>
    %145 = vector.broadcast %144 : vector<10x1xf32> to vector<10x32xf32>
    %146 = arith.mulf %141, %145 : vector<10x32xf32>
    %147 = vector.broadcast %126 : vector<1x32xf32> to vector<10x32xf32>
    %148 = arith.mulf %146, %147 : vector<10x32xf32>
    %149 = vector.broadcast %128 : vector<1x32xf32> to vector<10x32xf32>
    %150 = arith.addf %148, %149 : vector<10x32xf32>
    %c0_71 = arith.constant 0 : index
    %c0_72 = arith.constant 0 : index
    %c0_73 = arith.constant 0 : index
    %151 = vector.load %arg13[%c0_71, %c0_72, %c0_73] : memref<2x32x128xbf16, #tpu.memory_space<vmem>>, vector<1x32x128xbf16>
    %152 = vector.shape_cast %151 : vector<1x32x128xbf16> to vector<32x128xbf16>
    %153 = arith.truncf %150 : vector<10x32xf32> to vector<10x32xbf16>
    %cst_74 = arith.constant dense<0.000000e+00> : vector<10x128xf32>
    %154 = tpu.matmul %153, %152, %cst_74 {dimension_numbers = #tpu.dot_dimension_numbers<[1], [0], [0], [1], [0, 0, 1, 1], [], []>} : vector<10x32xbf16>, vector<32x128xbf16>, vector<10x128xf32> -> vector<10x128xf32>
    %c0_75 = arith.constant 0 : index
    %c0_76 = arith.constant 0 : index
    %c0_77 = arith.constant 0 : index
    %155 = vector.load %arg14[%c0_75, %c0_76, %c0_77] : memref<2x1x128xf32, #tpu.memory_space<vmem>>, vector<1x1x128xf32>
    %156 = vector.shape_cast %155 : vector<1x1x128xf32> to vector<1x128xf32>
    %157 = vector.broadcast %156 : vector<1x128xf32> to vector<10x128xf32>
    %158 = arith.addf %154, %157 : vector<10x128xf32>
    %159 = arith.mulf %158, %158 : vector<10x128xf32>
    %160 = arith.mulf %158, %159 : vector<10x128xf32>
    %cst_78 = arith.constant 4.471500e-02 : f32
    %161 = vector.broadcast %cst_78 : f32 to vector<10x128xf32>
    %162 = arith.mulf %161, %160 : vector<10x128xf32>
    %163 = arith.addf %158, %162 : vector<10x128xf32>
    %cst_79 = arith.constant 0.797884583 : f32
    %164 = vector.broadcast %cst_79 : f32 to vector<10x128xf32>
    %165 = arith.mulf %164, %163 : vector<10x128xf32>
    %166 = math.tanh %165 : vector<10x128xf32>
    %cst_80 = arith.constant 1.000000e+00 : f32
    %167 = vector.broadcast %cst_80 : f32 to vector<10x128xf32>
    %168 = arith.addf %167, %166 : vector<10x128xf32>
    %cst_81 = arith.constant 5.000000e-01 : f32
    %169 = vector.broadcast %cst_81 : f32 to vector<10x128xf32>
    %170 = arith.mulf %169, %168 : vector<10x128xf32>
    %171 = arith.mulf %158, %170 : vector<10x128xf32>
    %c0_82 = arith.constant 0 : index
    %c0_83 = arith.constant 0 : index
    %c0_84 = arith.constant 0 : index
    %172 = vector.load %arg15[%c0_82, %c0_83, %c0_84] : memref<2x128x32xbf16, #tpu.memory_space<vmem>>, vector<1x128x32xbf16>
    %173 = vector.shape_cast %172 : vector<1x128x32xbf16> to vector<128x32xbf16>
    %174 = arith.truncf %171 : vector<10x128xf32> to vector<10x128xbf16>
    %cst_85 = arith.constant dense<0.000000e+00> : vector<10x32xf32>
    %175 = tpu.matmul %174, %173, %cst_85 {dimension_numbers = #tpu.dot_dimension_numbers<[1], [0], [0], [1], [0, 0, 1, 1], [], []>} : vector<10x128xbf16>, vector<128x32xbf16>, vector<10x32xf32> -> vector<10x32xf32>
    %c0_86 = arith.constant 0 : index
    %c0_87 = arith.constant 0 : index
    %c0_88 = arith.constant 0 : index
    %176 = vector.load %arg16[%c0_86, %c0_87, %c0_88] : memref<2x1x32xf32, #tpu.memory_space<vmem>>, vector<1x1x32xf32>
    %177 = vector.shape_cast %176 : vector<1x1x32xf32> to vector<1x32xf32>
    %178 = vector.broadcast %177 : vector<1x32xf32> to vector<10x32xf32>
    %179 = arith.addf %175, %178 : vector<10x32xf32>
    %180 = arith.addf %124, %179 : vector<10x32xf32>
    %c1 = arith.constant 1 : index
    %c0_89 = arith.constant 0 : index
    %c0_90 = arith.constant 0 : index
    %181 = vector.load %arg5[%c1, %c0_89, %c0_90] : memref<2x1x32xf32, #tpu.memory_space<vmem>>, vector<1x1x32xf32>
    %182 = vector.shape_cast %181 : vector<1x1x32xf32> to vector<1x32xf32>
    %c1_91 = arith.constant 1 : index
    %c0_92 = arith.constant 0 : index
    %c0_93 = arith.constant 0 : index
    %183 = vector.load %arg6[%c1_91, %c0_92, %c0_93] : memref<2x1x32xf32, #tpu.memory_space<vmem>>, vector<1x1x32xf32>
    %184 = vector.shape_cast %183 : vector<1x1x32xf32> to vector<1x32xf32>
    %cst_94 = arith.constant dense<0.000000e+00> : vector<10xf32>
    %185 = vector.multi_reduction <add>, %180, %cst_94 [1] : vector<10x32xf32> to vector<10xf32>
    %186 = vector.shape_cast %185 : vector<10xf32> to vector<10x1xf32>
    %cst_95 = arith.constant 3.200000e+01 : f32
    %187 = vector.broadcast %cst_95 : f32 to vector<10x1xf32>
    %188 = arith.divf %186, %187 : vector<10x1xf32>
    %189 = vector.broadcast %188 : vector<10x1xf32> to vector<10x32xf32>
    %190 = arith.subf %180, %189 : vector<10x32xf32>
    %191 = arith.mulf %190, %190 : vector<10x32xf32>
    %cst_96 = arith.constant dense<0.000000e+00> : vector<10xf32>
    %192 = vector.multi_reduction <add>, %191, %cst_96 [1] : vector<10x32xf32> to vector<10xf32>
    %193 = vector.shape_cast %192 : vector<10xf32> to vector<10x1xf32>
    %cst_97 = arith.constant 3.200000e+01 : f32
    %194 = vector.broadcast %cst_97 : f32 to vector<10x1xf32>
    %195 = arith.divf %193, %194 : vector<10x1xf32>
    %196 = vector.broadcast %188 : vector<10x1xf32> to vector<10x32xf32>
    %197 = arith.subf %180, %196 : vector<10x32xf32>
    %cst_98 = arith.constant 9.99999996E-13 : f32
    %198 = vector.broadcast %cst_98 : f32 to vector<10x1xf32>
    %199 = arith.addf %195, %198 : vector<10x1xf32>
    %200 = math.rsqrt %199 : vector<10x1xf32>
    %201 = vector.broadcast %200 : vector<10x1xf32> to vector<10x32xf32>
    %202 = arith.mulf %197, %201 : vector<10x32xf32>
    %203 = vector.broadcast %182 : vector<1x32xf32> to vector<10x32xf32>
    %204 = arith.mulf %202, %203 : vector<10x32xf32>
    %205 = vector.broadcast %184 : vector<1x32xf32> to vector<10x32xf32>
    %206 = arith.addf %204, %205 : vector<10x32xf32>
    %c1_99 = arith.constant 1 : index
    %c0_100 = arith.constant 0 : index
    %c0_101 = arith.constant 0 : index
    %207 = vector.load %arg7[%c1_99, %c0_100, %c0_101] : memref<2x32x96xbf16, #tpu.memory_space<vmem>>, vector<1x32x96xbf16>
    %208 = vector.shape_cast %207 : vector<1x32x96xbf16> to vector<32x96xbf16>
    %209 = arith.truncf %206 : vector<10x32xf32> to vector<10x32xbf16>
    %cst_102 = arith.constant dense<0.000000e+00> : vector<10x96xf32>
    %210 = tpu.matmul %209, %208, %cst_102 {dimension_numbers = #tpu.dot_dimension_numbers<[1], [0], [0], [1], [0, 0, 1, 1], [], []>} : vector<10x32xbf16>, vector<32x96xbf16>, vector<10x96xf32> -> vector<10x96xf32>
    %c1_103 = arith.constant 1 : index
    %c0_104 = arith.constant 0 : index
    %c0_105 = arith.constant 0 : index
    %211 = vector.load %arg8[%c1_103, %c0_104, %c0_105] : memref<2x1x96xf32, #tpu.memory_space<vmem>>, vector<1x1x96xf32>
    %212 = vector.shape_cast %211 : vector<1x1x96xf32> to vector<1x96xf32>
    %213 = vector.broadcast %212 : vector<1x96xf32> to vector<10x96xf32>
    %214 = arith.addf %210, %213 : vector<10x96xf32>
    %215 = vector.extract_strided_slice %214 {offsets = [0, 0], sizes = [10, 16], strides = [1, 1]} : vector<10x96xf32> to vector<10x16xf32>
    %216 = vector.extract_strided_slice %214 {offsets = [0, 32], sizes = [10, 16], strides = [1, 1]} : vector<10x96xf32> to vector<10x16xf32>
    %217 = vector.extract_strided_slice %214 {offsets = [0, 64], sizes = [10, 16], strides = [1, 1]} : vector<10x96xf32> to vector<10x16xf32>
    %218 = arith.truncf %215 : vector<10x16xf32> to vector<10x16xbf16>
    %219 = arith.truncf %216 : vector<10x16xf32> to vector<10x16xbf16>
    %cst_106 = arith.constant dense<0.000000e+00> : vector<10x10xf32>
    %220 = tpu.matmul %218, %219, %cst_106 {dimension_numbers = #tpu.dot_dimension_numbers<[1], [1], [0], [0], [0, 0, 1, 0], [], []>} : vector<10x16xbf16>, vector<10x16xbf16>, vector<10x10xf32> -> vector<10x10xf32>
    %cst_107 = arith.constant 2.500000e-01 : f32
    %221 = vector.broadcast %cst_107 : f32 to vector<10x10xf32>
    %222 = arith.mulf %220, %221 : vector<10x10xf32>
    %223 = arith.addf %222, %34 : vector<10x10xf32>
    %cst_108 = arith.constant dense<0xFF800000> : vector<10xf32>
    %224 = vector.multi_reduction <maximumf>, %223, %cst_108 [1] : vector<10x10xf32> to vector<10xf32>
    %225 = vector.shape_cast %224 : vector<10xf32> to vector<10x1xf32>
    %226 = vector.broadcast %225 : vector<10x1xf32> to vector<10x10xf32>
    %227 = arith.subf %223, %226 : vector<10x10xf32>
    %228 = math.exp %227 : vector<10x10xf32>
    %cst_109 = arith.constant dense<0.000000e+00> : vector<10xf32>
    %229 = vector.multi_reduction <add>, %228, %cst_109 [1] : vector<10x10xf32> to vector<10xf32>
    %230 = vector.shape_cast %229 : vector<10xf32> to vector<10x1xf32>
    %231 = tpu.reciprocal %230 {approx = true} : vector<10x1xf32> -> vector<10x1xf32>
    %232 = vector.broadcast %231 : vector<10x1xf32> to vector<10x10xf32>
    %233 = arith.mulf %228, %232 : vector<10x10xf32>
    %234 = arith.truncf %233 : vector<10x10xf32> to vector<10x10xbf16>
    %235 = arith.truncf %217 : vector<10x16xf32> to vector<10x16xbf16>
    %cst_110 = arith.constant dense<0.000000e+00> : vector<10x16xf32>
    %236 = tpu.matmul %234, %235, %cst_110 {dimension_numbers = #tpu.dot_dimension_numbers<[1], [0], [0], [1], [0, 0, 1, 1], [], []>} : vector<10x10xbf16>, vector<10x16xbf16>, vector<10x16xf32> -> vector<10x16xf32>
    %c0_111 = arith.constant 0 : index
    %c0_112 = arith.constant 0 : index
    %237 = vector.load %arg22[%c0_111, %c0_112] : memref<10x32xf32, #tpu.memory_space<vmem>>, vector<10x16xf32>
    tpu.vector_store %arg22[%c0_111, %c0_112], %236 {strides = array<i32>} : memref<10x32xf32, #tpu.memory_space<vmem>>, vector<10x16xf32>,
    %238 = vector.extract_strided_slice %214 {offsets = [0, 16], sizes = [10, 16], strides = [1, 1]} : vector<10x96xf32> to vector<10x16xf32>
    %239 = vector.extract_strided_slice %214 {offsets = [0, 48], sizes = [10, 16], strides = [1, 1]} : vector<10x96xf32> to vector<10x16xf32>
    %240 = vector.extract_strided_slice %214 {offsets = [0, 80], sizes = [10, 16], strides = [1, 1]} : vector<10x96xf32> to vector<10x16xf32>
    %241 = arith.truncf %238 : vector<10x16xf32> to vector<10x16xbf16>
    %242 = arith.truncf %239 : vector<10x16xf32> to vector<10x16xbf16>
    %cst_113 = arith.constant dense<0.000000e+00> : vector<10x10xf32>
    %243 = tpu.matmul %241, %242, %cst_113 {dimension_numbers = #tpu.dot_dimension_numbers<[1], [1], [0], [0], [0, 0, 1, 0], [], []>} : vector<10x16xbf16>, vector<10x16xbf16>, vector<10x10xf32> -> vector<10x10xf32>
    %cst_114 = arith.constant 2.500000e-01 : f32
    %244 = vector.broadcast %cst_114 : f32 to vector<10x10xf32>
    %245 = arith.mulf %243, %244 : vector<10x10xf32>
    %246 = arith.addf %245, %34 : vector<10x10xf32>
    %cst_115 = arith.constant dense<0xFF800000> : vector<10xf32>
    %247 = vector.multi_reduction <maximumf>, %246, %cst_115 [1] : vector<10x10xf32> to vector<10xf32>
    %248 = vector.shape_cast %247 : vector<10xf32> to vector<10x1xf32>
    %249 = vector.broadcast %248 : vector<10x1xf32> to vector<10x10xf32>
    %250 = arith.subf %246, %249 : vector<10x10xf32>
    %251 = math.exp %250 : vector<10x10xf32>
    %cst_116 = arith.constant dense<0.000000e+00> : vector<10xf32>
    %252 = vector.multi_reduction <add>, %251, %cst_116 [1] : vector<10x10xf32> to vector<10xf32>
    %253 = vector.shape_cast %252 : vector<10xf32> to vector<10x1xf32>
    %254 = tpu.reciprocal %253 {approx = true} : vector<10x1xf32> -> vector<10x1xf32>
    %255 = vector.broadcast %254 : vector<10x1xf32> to vector<10x10xf32>
    %256 = arith.mulf %251, %255 : vector<10x10xf32>
    %257 = arith.truncf %256 : vector<10x10xf32> to vector<10x10xbf16>
    %258 = arith.truncf %240 : vector<10x16xf32> to vector<10x16xbf16>
    %cst_117 = arith.constant dense<0.000000e+00> : vector<10x16xf32>
    %259 = tpu.matmul %257, %258, %cst_117 {dimension_numbers = #tpu.dot_dimension_numbers<[1], [0], [0], [1], [0, 0, 1, 1], [], []>} : vector<10x10xbf16>, vector<10x16xbf16>, vector<10x16xf32> -> vector<10x16xf32>
    %c0_118 = arith.constant 0 : index
    %c16_119 = arith.constant 16 : index
    %260 = vector.load %arg22[%c0_118, %c16_119] : memref<10x32xf32, #tpu.memory_space<vmem>>, vector<10x16xf32>
    tpu.vector_store %arg22[%c0_118, %c16_119], %259 {strides = array<i32>} : memref<10x32xf32, #tpu.memory_space<vmem>>, vector<10x16xf32>,
    %c0_120 = arith.constant 0 : index
    %c0_121 = arith.constant 0 : index
    %261 = vector.load %arg22[%c0_120, %c0_121] : memref<10x32xf32, #tpu.memory_space<vmem>>, vector<10x32xf32>
    %c1_122 = arith.constant 1 : index
    %c0_123 = arith.constant 0 : index
    %c0_124 = arith.constant 0 : index
    %262 = vector.load %arg9[%c1_122, %c0_123, %c0_124] : memref<2x32x32xbf16, #tpu.memory_space<vmem>>, vector<1x32x32xbf16>
    %263 = vector.shape_cast %262 : vector<1x32x32xbf16> to vector<32x32xbf16>
    %264 = arith.truncf %261 : vector<10x32xf32> to vector<10x32xbf16>
    %cst_125 = arith.constant dense<0.000000e+00> : vector<10x32xf32>
    %265 = tpu.matmul %264, %263, %cst_125 {dimension_numbers = #tpu.dot_dimension_numbers<[1], [0], [0], [1], [0, 0, 1, 1], [], []>} : vector<10x32xbf16>, vector<32x32xbf16>, vector<10x32xf32> -> vector<10x32xf32>
    %c1_126 = arith.constant 1 : index
    %c0_127 = arith.constant 0 : index
    %c0_128 = arith.constant 0 : index
    %266 = vector.load %arg10[%c1_126, %c0_127, %c0_128] : memref<2x1x32xf32, #tpu.memory_space<vmem>>, vector<1x1x32xf32>
    %267 = vector.shape_cast %266 : vector<1x1x32xf32> to vector<1x32xf32>
    %268 = vector.broadcast %267 : vector<1x32xf32> to vector<10x32xf32>
    %269 = arith.addf %265, %268 : vector<10x32xf32>
    %270 = arith.addf %180, %269 : vector<10x32xf32>
    %c1_129 = arith.constant 1 : index
    %c0_130 = arith.constant 0 : index
    %c0_131 = arith.constant 0 : index
    %271 = vector.load %arg11[%c1_129, %c0_130, %c0_131] : memref<2x1x32xf32, #tpu.memory_space<vmem>>, vector<1x1x32xf32>
    %272 = vector.shape_cast %271 : vector<1x1x32xf32> to vector<1x32xf32>
    %c1_132 = arith.constant 1 : index
    %c0_133 = arith.constant 0 : index
    %c0_134 = arith.constant 0 : index
    %273 = vector.load %arg12[%c1_132, %c0_133, %c0_134] : memref<2x1x32xf32, #tpu.memory_space<vmem>>, vector<1x1x32xf32>
    %274 = vector.shape_cast %273 : vector<1x1x32xf32> to vector<1x32xf32>
    %cst_135 = arith.constant dense<0.000000e+00> : vector<10xf32>
    %275 = vector.multi_reduction <add>, %270, %cst_135 [1] : vector<10x32xf32> to vector<10xf32>
    %276 = vector.shape_cast %275 : vector<10xf32> to vector<10x1xf32>
    %cst_136 = arith.constant 3.200000e+01 : f32
    %277 = vector.broadcast %cst_136 : f32 to vector<10x1xf32>
    %278 = arith.divf %276, %277 : vector<10x1xf32>
    %279 = vector.broadcast %278 : vector<10x1xf32> to vector<10x32xf32>
    %280 = arith.subf %270, %279 : vector<10x32xf32>
    %281 = arith.mulf %280, %280 : vector<10x32xf32>
    %cst_137 = arith.constant dense<0.000000e+00> : vector<10xf32>
    %282 = vector.multi_reduction <add>, %281, %cst_137 [1] : vector<10x32xf32> to vector<10xf32>
    %283 = vector.shape_cast %282 : vector<10xf32> to vector<10x1xf32>
    %cst_138 = arith.constant 3.200000e+01 : f32
    %284 = vector.broadcast %cst_138 : f32 to vector<10x1xf32>
    %285 = arith.divf %283, %284 : vector<10x1xf32>
    %286 = vector.broadcast %278 : vector<10x1xf32> to vector<10x32xf32>
    %287 = arith.subf %270, %286 : vector<10x32xf32>
    %cst_139 = arith.constant 9.99999996E-13 : f32
    %288 = vector.broadcast %cst_139 : f32 to vector<10x1xf32>
    %289 = arith.addf %285, %288 : vector<10x1xf32>
    %290 = math.rsqrt %289 : vector<10x1xf32>
    %291 = vector.broadcast %290 : vector<10x1xf32> to vector<10x32xf32>
    %292 = arith.mulf %287, %291 : vector<10x32xf32>
    %293 = vector.broadcast %272 : vector<1x32xf32> to vector<10x32xf32>
    %294 = arith.mulf %292, %293 : vector<10x32xf32>
    %295 = vector.broadcast %274 : vector<1x32xf32> to vector<10x32xf32>
    %296 = arith.addf %294, %295 : vector<10x32xf32>
    %c1_140 = arith.constant 1 : index
    %c0_141 = arith.constant 0 : index
    %c0_142 = arith.constant 0 : index
    %297 = vector.load %arg13[%c1_140, %c0_141, %c0_142] : memref<2x32x128xbf16, #tpu.memory_space<vmem>>, vector<1x32x128xbf16>
    %298 = vector.shape_cast %297 : vector<1x32x128xbf16> to vector<32x128xbf16>
    %299 = arith.truncf %296 : vector<10x32xf32> to vector<10x32xbf16>
    %cst_143 = arith.constant dense<0.000000e+00> : vector<10x128xf32>
    %300 = tpu.matmul %299, %298, %cst_143 {dimension_numbers = #tpu.dot_dimension_numbers<[1], [0], [0], [1], [0, 0, 1, 1], [], []>} : vector<10x32xbf16>, vector<32x128xbf16>, vector<10x128xf32> -> vector<10x128xf32>
    %c1_144 = arith.constant 1 : index
    %c0_145 = arith.constant 0 : index
    %c0_146 = arith.constant 0 : index
    %301 = vector.load %arg14[%c1_144, %c0_145, %c0_146] : memref<2x1x128xf32, #tpu.memory_space<vmem>>, vector<1x1x128xf32>
    %302 = vector.shape_cast %301 : vector<1x1x128xf32> to vector<1x128xf32>
    %303 = vector.broadcast %302 : vector<1x128xf32> to vector<10x128xf32>
    %304 = arith.addf %300, %303 : vector<10x128xf32>
    %305 = arith.mulf %304, %304 : vector<10x128xf32>
    %306 = arith.mulf %304, %305 : vector<10x128xf32>
    %cst_147 = arith.constant 4.471500e-02 : f32
    %307 = vector.broadcast %cst_147 : f32 to vector<10x128xf32>
    %308 = arith.mulf %307, %306 : vector<10x128xf32>
    %309 = arith.addf %304, %308 : vector<10x128xf32>
    %cst_148 = arith.constant 0.797884583 : f32
    %310 = vector.broadcast %cst_148 : f32 to vector<10x128xf32>
    %311 = arith.mulf %310, %309 : vector<10x128xf32>
    %312 = math.tanh %311 : vector<10x128xf32>
    %cst_149 = arith.constant 1.000000e+00 : f32
    %313 = vector.broadcast %cst_149 : f32 to vector<10x128xf32>
    %314 = arith.addf %313, %312 : vector<10x128xf32>
    %cst_150 = arith.constant 5.000000e-01 : f32
    %315 = vector.broadcast %cst_150 : f32 to vector<10x128xf32>
    %316 = arith.mulf %315, %314 : vector<10x128xf32>
    %317 = arith.mulf %304, %316 : vector<10x128xf32>
    %c1_151 = arith.constant 1 : index
    %c0_152 = arith.constant 0 : index
    %c0_153 = arith.constant 0 : index
    %318 = vector.load %arg15[%c1_151, %c0_152, %c0_153] : memref<2x128x32xbf16, #tpu.memory_space<vmem>>, vector<1x128x32xbf16>
    %319 = vector.shape_cast %318 : vector<1x128x32xbf16> to vector<128x32xbf16>
    %320 = arith.truncf %317 : vector<10x128xf32> to vector<10x128xbf16>
    %cst_154 = arith.constant dense<0.000000e+00> : vector<10x32xf32>
    %321 = tpu.matmul %320, %319, %cst_154 {dimension_numbers = #tpu.dot_dimension_numbers<[1], [0], [0], [1], [0, 0, 1, 1], [], []>} : vector<10x128xbf16>, vector<128x32xbf16>, vector<10x32xf32> -> vector<10x32xf32>
    %c1_155 = arith.constant 1 : index
    %c0_156 = arith.constant 0 : index
    %c0_157 = arith.constant 0 : index
    %322 = vector.load %arg16[%c1_155, %c0_156, %c0_157] : memref<2x1x32xf32, #tpu.memory_space<vmem>>, vector<1x1x32xf32>
    %323 = vector.shape_cast %322 : vector<1x1x32xf32> to vector<1x32xf32>
    %324 = vector.broadcast %323 : vector<1x32xf32> to vector<10x32xf32>
    %325 = arith.addf %321, %324 : vector<10x32xf32>
    %326 = arith.addf %270, %325 : vector<10x32xf32>
    %c0_158 = arith.constant 0 : index
    %c0_159 = arith.constant 0 : index
    %327 = vector.load %arg17[%c0_158, %c0_159] : memref<1x32xf32, #tpu.memory_space<vmem>>, vector<1x32xf32>
    %c0_160 = arith.constant 0 : index
    %c0_161 = arith.constant 0 : index
    %328 = vector.load %arg18[%c0_160, %c0_161] : memref<1x32xf32, #tpu.memory_space<vmem>>, vector<1x32xf32>
    %cst_162 = arith.constant dense<0.000000e+00> : vector<10xf32>
    %329 = vector.multi_reduction <add>, %326, %cst_162 [1] : vector<10x32xf32> to vector<10xf32>
    %330 = vector.shape_cast %329 : vector<10xf32> to vector<10x1xf32>
    %cst_163 = arith.constant 3.200000e+01 : f32
    %331 = vector.broadcast %cst_163 : f32 to vector<10x1xf32>
    %332 = arith.divf %330, %331 : vector<10x1xf32>
    %333 = vector.broadcast %332 : vector<10x1xf32> to vector<10x32xf32>
    %334 = arith.subf %326, %333 : vector<10x32xf32>
    %335 = arith.mulf %334, %334 : vector<10x32xf32>
    %cst_164 = arith.constant dense<0.000000e+00> : vector<10xf32>
    %336 = vector.multi_reduction <add>, %335, %cst_164 [1] : vector<10x32xf32> to vector<10xf32>
    %337 = vector.shape_cast %336 : vector<10xf32> to vector<10x1xf32>
    %cst_165 = arith.constant 3.200000e+01 : f32
    %338 = vector.broadcast %cst_165 : f32 to vector<10x1xf32>
    %339 = arith.divf %337, %338 : vector<10x1xf32>
    %340 = vector.broadcast %332 : vector<10x1xf32> to vector<10x32xf32>
    %341 = arith.subf %326, %340 : vector<10x32xf32>
    %cst_166 = arith.constant 9.99999996E-13 : f32
    %342 = vector.broadcast %cst_166 : f32 to vector<10x1xf32>
    %343 = arith.addf %339, %342 : vector<10x1xf32>
    %344 = math.rsqrt %343 : vector<10x1xf32>
    %345 = vector.broadcast %344 : vector<10x1xf32> to vector<10x32xf32>
    %346 = arith.mulf %341, %345 : vector<10x32xf32>
    %347 = vector.broadcast %327 : vector<1x32xf32> to vector<10x32xf32>
    %348 = arith.mulf %346, %347 : vector<10x32xf32>
    %349 = vector.broadcast %328 : vector<1x32xf32> to vector<10x32xf32>
    %350 = arith.addf %348, %349 : vector<10x32xf32>
    %351 = vector.extract_strided_slice %350 {offsets = [0, 0], sizes = [2, 32], strides = [1, 1]} : vector<10x32xf32> to vector<2x32xf32>
    %c0_167 = arith.constant 0 : index
    %c0_168 = arith.constant 0 : index
    %352 = vector.load %arg19[%c0_167, %c0_168] : memref<32x128xbf16, #tpu.memory_space<vmem>>, vector<32x128xbf16>
    %353 = arith.truncf %351 : vector<2x32xf32> to vector<2x32xbf16>
    %cst_169 = arith.constant dense<0.000000e+00> : vector<2x128xf32>
    %354 = tpu.matmul %353, %352, %cst_169 {dimension_numbers = #tpu.dot_dimension_numbers<[1], [0], [0], [1], [0, 0, 1, 1], [], []>} : vector<2x32xbf16>, vector<32x128xbf16>, vector<2x128xf32> -> vector<2x128xf32>
    %c0_170 = arith.constant 0 : index
    %c0_171 = arith.constant 0 : index
    %355 = vector.load %arg20[%c0_170, %c0_171] : memref<1x128xf32, #tpu.memory_space<vmem>>, vector<1x128xf32>
    %356 = vector.broadcast %355 : vector<1x128xf32> to vector<2x128xf32>
    %357 = arith.addf %354, %356 : vector<2x128xf32>
    %c0_172 = arith.constant 0 : index
    %c0_173 = arith.constant 0 : index
    %358 = vector.load %arg21[%c0_172, %c0_173] : memref<2x128xf32, #tpu.memory_space<vmem>>, vector<2x128xf32>
    tpu.vector_store %arg21[%c0_172, %c0_173], %357 {strides = array<i32>} : memref<2x128xf32, #tpu.memory_space<vmem>>, vector<2x128xf32>,
    return
  }
  func.func @transform_0(%arg0: i32) -> (i32, i32) {
    %c0_i32 = arith.constant 0 : i32
    %c0_i32_0 = arith.constant 0 : i32
    return %arg0, %c0_i32 : i32, i32
  }
  func.func @transform_1(%arg0: i32) -> (i32, i32) {
    %c0_i32 = arith.constant 0 : i32
    %c0_i32_0 = arith.constant 0 : i32
    %c0_i32_1 = arith.constant 0 : i32
    return %c0_i32, %c0_i32_0 : i32, i32
  }
  func.func @transform_2(%arg0: i32) -> (i32, i32) {
    %c0_i32 = arith.constant 0 : i32
    %c0_i32_0 = arith.constant 0 : i32
    %c0_i32_1 = arith.constant 0 : i32
    return %c0_i32, %c0_i32_0 : i32, i32
  }
  func.func @transform_3(%arg0: i32) -> (i32, i32) {
    %c0_i32 = arith.constant 0 : i32
    %c0_i32_0 = arith.constant 0 : i32
    %c0_i32_1 = arith.constant 0 : i32
    return %c0_i32, %c0_i32_0 : i32, i32
  }
  func.func @transform_4(%arg0: i32) -> (i32, i32, i32) {
    %c0_i32 = arith.constant 0 : i32
    %c0_i32_0 = arith.constant 0 : i32
    %c0_i32_1 = arith.constant 0 : i32
    %c0_i32_2 = arith.constant 0 : i32
    return %c0_i32, %c0_i32_0, %c0_i32_1 : i32, i32, i32
  }
  func.func @transform_5(%arg0: i32) -> (i32, i32, i32) {
    %c0_i32 = arith.constant 0 : i32
    %c0_i32_0 = arith.constant 0 : i32
    %c0_i32_1 = arith.constant 0 : i32
    %c0_i32_2 = arith.constant 0 : i32
    return %c0_i32, %c0_i32_0, %c0_i32_1 : i32, i32, i32
  }
  func.func @transform_6(%arg0: i32) -> (i32, i32, i32) {
    %c0_i32 = arith.constant 0 : i32
    %c0_i32_0 = arith.constant 0 : i32
    %c0_i32_1 = arith.constant 0 : i32
    %c0_i32_2 = arith.constant 0 : i32
    return %c0_i32, %c0_i32_0, %c0_i32_1 : i32, i32, i32
  }
  func.func @transform_7(%arg0: i32) -> (i32, i32, i32) {
    %c0_i32 = arith.constant 0 : i32
    %c0_i32_0 = arith.constant 0 : i32
    %c0_i32_1 = arith.constant 0 : i32
    %c0_i32_2 = arith.constant 0 : i32
    return %c0_i32, %c0_i32_0, %c0_i32_1 : i32, i32, i32
  }
  func.func @transform_8(%arg0: i32) -> (i32, i32, i32) {
    %c0_i32 = arith.constant 0 : i32
    %c0_i32_0 = arith.constant 0 : i32
    %c0_i32_1 = arith.constant 0 : i32
    %c0_i32_2 = arith.constant 0 : i32
    return %c0_i32, %c0_i32_0, %c0_i32_1 : i32, i32, i32
  }
  func.func @transform_9(%arg0: i32) -> (i32, i32, i32) {
    %c0_i32 = arith.constant 0 : i32
    %c0_i32_0 = arith.constant 0 : i32
    %c0_i32_1 = arith.constant 0 : i32
    %c0_i32_2 = arith.constant 0 : i32
    return %c0_i32, %c0_i32_0, %c0_i32_1 : i32, i32, i32
  }
  func.func @transform_10(%arg0: i32) -> (i32, i32, i32) {
    %c0_i32 = arith.constant 0 : i32
    %c0_i32_0 = arith.constant 0 : i32
    %c0_i32_1 = arith.constant 0 : i32
    %c0_i32_2 = arith.constant 0 : i32
    return %c0_i32, %c0_i32_0, %c0_i32_1 : i32, i32, i32
  }
  func.func @transform_11(%arg0: i32) -> (i32, i32, i32) {
    %c0_i32 = arith.constant 0 : i32
    %c0_i32_0 = arith.constant 0 : i32
    %c0_i32_1 = arith.constant 0 : i32
    %c0_i32_2 = arith.constant 0 : i32
    return %c0_i32, %c0_i32_0, %c0_i32_1 : i32, i32, i32
  }
  func.func @transform_12(%arg0: i32) -> (i32, i32, i32) {
    %c0_i32 = arith.constant 0 : i32
    %c0_i32_0 = arith.constant 0 : i32
    %c0_i32_1 = arith.constant 0 : i32
    %c0_i32_2 = arith.constant 0 : i32
    return %c0_i32, %c0_i32_0, %c0_i32_1 : i32, i32, i32
  }
  func.func @transform_13(%arg0: i32) -> (i32, i32, i32) {
    %c0_i32 = arith.constant 0 : i32
    %c0_i32_0 = arith.constant 0 : i32
    %c0_i32_1 = arith.constant 0 : i32
    %c0_i32_2 = arith.constant 0 : i32
    return %c0_i32, %c0_i32_0, %c0_i32_1 : i32, i32, i32
  }
  func.func @transform_14(%arg0: i32) -> (i32, i32, i32) {
    %c0_i32 = arith.constant 0 : i32
    %c0_i32_0 = arith.constant 0 : i32
    %c0_i32_1 = arith.constant 0 : i32
    %c0_i32_2 = arith.constant 0 : i32
    return %c0_i32, %c0_i32_0, %c0_i32_1 : i32, i32, i32
  }
  func.func @transform_15(%arg0: i32) -> (i32, i32, i32) {
    %c0_i32 = arith.constant 0 : i32
    %c0_i32_0 = arith.constant 0 : i32
    %c0_i32_1 = arith.constant 0 : i32
    %c0_i32_2 = arith.constant 0 : i32
    return %c0_i32, %c0_i32_0, %c0_i32_1 : i32, i32, i32
  }
  func.func @transform_16(%arg0: i32) -> (i32, i32) {
    %c0_i32 = arith.constant 0 : i32
    %c0_i32_0 = arith.constant 0 : i32
    %c0_i32_1 = arith.constant 0 : i32
    return %c0_i32, %c0_i32_0 : i32, i32
  }
  func.func @transform_17(%arg0: i32) -> (i32, i32) {
    %c0_i32 = arith.constant 0 : i32
    %c0_i32_0 = arith.constant 0 : i32
    %c0_i32_1 = arith.constant 0 : i32
    return %c0_i32, %c0_i32_0 : i32, i32
  }
  func.func @transform_18(%arg0: i32) -> (i32, i32) {
    %c0_i32 = arith.constant 0 : i32
    %c0_i32_0 = arith.constant 0 : i32
    %c0_i32_1 = arith.constant 0 : i32
    return %c0_i32, %c0_i32_0 : i32, i32
  }
  func.func @transform_19(%arg0: i32) -> (i32, i32) {
    %c0_i32 = arith.constant 0 : i32
    %c0_i32_0 = arith.constant 0 : i32
    %c0_i32_1 = arith.constant 0 : i32
    return %c0_i32, %c0_i32_0 : i32, i32
  }
  func.func @transform_20(%arg0: i32) -> (i32, i32) {
    %c0_i32 = arith.constant 0 : i32
    %c0_i32_0 = arith.constant 0 : i32
    return %arg0, %c0_i32 : i32, i32
  }
}

</mosaic_0001>

<llo_original>
// kernel: vit_forward.1
$region0: #{vit_forward.1}
  #allocation0 [shape = 'u32[]', space=smem, size = 0x4, offset = 0x4, fixed_abs, tag = 'smem constant byte address 0x4 - core index']
  #allocation1 [shape = 'u32[144,128]{1,0:T(1,128)}', space=vmem, size = 0x12000, scoped, tag = 'internal scratch']
  #allocation2 [shape = 'f32[10,32]{1,0:T(8,128)}', space=vmem, size = 0x2000, scoped, tag = 'scratch operand']
  %s0 = inlined_call_operand.vmem [shape: bf16[8,768], index: 0, kind: input, shape index: {}]
  %s1 = inlined_call_operand.vmem [shape: bf16[768,32], index: 1, kind: input, shape index: {}]
  %s2 = inlined_call_operand.vmem [shape: f32[1,32], index: 2, kind: input, shape index: {}]
  %s3 = inlined_call_operand.vmem [shape: f32[8,32], index: 3, kind: input, shape index: {}]
  %s4 = inlined_call_operand.vmem [shape: f32[2,1,32], index: 4, kind: input, shape index: {}]
  %s5 = inlined_call_operand.vmem [shape: f32[2,1,32], index: 5, kind: input, shape index: {}]
  %s6 = inlined_call_operand.vmem [shape: bf16[2,32,96], index: 6, kind: input, shape index: {}]
  %s7 = inlined_call_operand.vmem [shape: f32[2,1,96], index: 7, kind: input, shape index: {}]
  %s8 = inlined_call_operand.vmem [shape: bf16[2,32,32], index: 8, kind: input, shape index: {}]
  %s9 = inlined_call_operand.vmem [shape: f32[2,1,32], index: 9, kind: input, shape index: {}]
  %s10 = inlined_call_operand.vmem [shape: f32[2,1,32], index: 10, kind: input, shape index: {}]
  %s11 = inlined_call_operand.vmem [shape: f32[2,1,32], index: 11, kind: input, shape index: {}]
  %s12 = inlined_call_operand.vmem [shape: bf16[2,32,128], index: 12, kind: input, shape index: {}]
  %s13 = inlined_call_operand.vmem [shape: f32[2,1,128], index: 13, kind: input, shape index: {}]
  %s14 = inlined_call_operand.vmem [shape: bf16[2,128,32], index: 14, kind: input, shape index: {}]
  %s15 = inlined_call_operand.vmem [shape: f32[2,1,32], index: 15, kind: input, shape index: {}]
  %s16 = inlined_call_operand.vmem [shape: f32[1,32], index: 16, kind: input, shape index: {}]
  %s17 = inlined_call_operand.vmem [shape: f32[1,32], index: 17, kind: input, shape index: {}]
  %s18 = inlined_call_operand.vmem [shape: bf16[32,128], index: 18, kind: input, shape index: {}]
  %s19 = inlined_call_operand.vmem [shape: f32[1,128], index: 19, kind: input, shape index: {}]
  %s20 = inlined_call_operand.hbm [shape: f32[2,128], index: 20, kind: output, shape index: {}]
  %s21 = sld [smem:[#allocation0]]
  $region90: #{vit_forward.1} parent=0
    _
  %s23 = ssub.s32 1, %s21
  %s24 = scalar_select 0, %s23, %s21
  $region1: #{vit_forward.1} parent=0
    #allocation3 [shape = 'u8[1024]{0}', space=vmem, size = 0x400, scoped, tag = 'output window, operand 0, single buffered']
    #allocation4 [shape = 's32[1]{0}', space=sflag, size = 0x4, scoped, tag = 'scoped memory for vit_forward.1']
    %25 = vsyncpa [#allocation4], 0
    // Predicated region
    $region2: #{vit_forward.1} parent=1 // pred_check
      _
    $region3: #{vit_forward.1} parent=1 // pred_check_branch
      %27 = sbr.rel (0) target = $region5
    $region4: #{vit_forward.1} parent=1 // pred_region
      _
    $region5: #{vit_forward.1} parent=1 // pred_fallthru
      _
    // Predicated region
    $region6: #{vit_forward.1} parent=1 // pred_check
      _
    $region7: #{vit_forward.1} parent=1 // pred_check_branch
      %29 = sbr.rel (0) target = $region9
    $region8: #{vit_forward.1} parent=1 // pred_region
      _
    $region9: #{vit_forward.1} parent=1 // pred_fallthru
      _
    // Predicated region
    $region10: #{vit_forward.1} parent=1 // pred_check
      _
    $region11: #{vit_forward.1} parent=1 // pred_check_branch
      %31 = sbr.rel (0) target = $region13
    $region12: #{vit_forward.1} parent=1 // pred_region
      _
    $region13: #{vit_forward.1} parent=1 // pred_fallthru
      _
    // Predicated region
    $region14: #{vit_forward.1} parent=1 // pred_check
      _
    $region15: #{vit_forward.1} parent=1 // pred_check_branch
      %33 = sbr.rel (0) target = $region17
    $region16: #{vit_forward.1} parent=1 // pred_region
      _
    $region17: #{vit_forward.1} parent=1 // pred_fallthru
      _
    // Predicated region
    $region18: #{vit_forward.1} parent=1 // pred_check
      _
    $region19: #{vit_forward.1} parent=1 // pred_check_branch
      %35 = sbr.rel (0) target = $region21
    $region20: #{vit_forward.1} parent=1 // pred_region
      _
    $region21: #{vit_forward.1} parent=1 // pred_fallthru
      _
    // Predicated region
    $region22: #{vit_forward.1} parent=1 // pred_check
      _
    $region23: #{vit_forward.1} parent=1 // pred_check_branch
      %37 = sbr.rel (0) target = $region25
    $region24: #{vit_forward.1} parent=1 // pred_region
      _
    $region25: #{vit_forward.1} parent=1 // pred_fallthru
      _
    // Predicated region
    $region26: #{vit_forward.1} parent=1 // pred_check
      _
    $region27: #{vit_forward.1} parent=1 // pred_check_branch
      %39 = sbr.rel (0) target = $region29
    $region28: #{vit_forward.1} parent=1 // pred_region
      _
    $region29: #{vit_forward.1} parent=1 // pred_fallthru
      _
    // Predicated region
    $region30: #{vit_forward.1} parent=1 // pred_check
      _
    $region31: #{vit_forward.1} parent=1 // pred_check_branch
      %41 = sbr.rel (0) target = $region33
    $region32: #{vit_forward.1} parent=1 // pred_region
      _
    $region33: #{vit_forward.1} parent=1 // pred_fallthru
      _
    // Predicated region
    $region34: #{vit_forward.1} parent=1 // pred_check
      _
    $region35: #{vit_forward.1} parent=1 // pred_check_branch
      %43 = sbr.rel (0) target = $region37
    $region36: #{vit_forward.1} parent=1 // pred_region
      _
    $region37: #{vit_forward.1} parent=1 // pred_fallthru
      _
    // Predicated region
    $region38: #{vit_forward.1} parent=1 // pred_check
      _
    $region39: #{vit_forward.1} parent=1 // pred_check_branch
      %45 = sbr.rel (0) target = $region41
    $region40: #{vit_forward.1} parent=1 // pred_region
      _
    $region41: #{vit_forward.1} parent=1 // pred_fallthru
      _
    // Predicated region
    $region42: #{vit_forward.1} parent=1 // pred_check
      _
    $region43: #{vit_forward.1} parent=1 // pred_check_branch
      %47 = sbr.rel (0) target = $region45
    $region44: #{vit_forward.1} parent=1 // pred_region
      _
    $region45: #{vit_forward.1} parent=1 // pred_fallthru
      _
    // Predicated region
    $region46: #{vit_forward.1} parent=1 // pred_check
      _
    $region47: #{vit_forward.1} parent=1 // pred_check_branch
      %49 = sbr.rel (0) target = $region49
    $region48: #{vit_forward.1} parent=1 // pred_region
      _
    $region49: #{vit_forward.1} parent=1 // pred_fallthru
      _
    // Predicated region
    $region50: #{vit_forward.1} parent=1 // pred_check
      _
    $region51: #{vit_forward.1} parent=1 // pred_check_branch
      %51 = sbr.rel (0) target = $region53
    $region52: #{vit_forward.1} parent=1 // pred_region
      _
    $region53: #{vit_forward.1} parent=1 // pred_fallthru
      _
    // Predicated region
    $region54: #{vit_forward.1} parent=1 // pred_check
      _
    $region55: #{vit_forward.1} parent=1 // pred_check_branch
      %53 = sbr.rel (0) target = $region57
    $region56: #{vit_forward.1} parent=1 // pred_region
      _
    $region57: #{vit_forward.1} parent=1 // pred_fallthru
      _
    // Predicated region
    $region58: #{vit_forward.1} parent=1 // pred_check
      _
    $region59: #{vit_forward.1} parent=1 // pred_check_branch
      %55 = sbr.rel (0) target = $region61
    $region60: #{vit_forward.1} parent=1 // pred_region
      _
    $region61: #{vit_forward.1} parent=1 // pred_fallthru
      _
    // Predicated region
    $region62: #{vit_forward.1} parent=1 // pred_check
      _
    $region63: #{vit_forward.1} parent=1 // pred_check_branch
      %57 = sbr.rel (0) target = $region65
    $region64: #{vit_forward.1} parent=1 // pred_region
      _
    $region65: #{vit_forward.1} parent=1 // pred_fallthru
      _
    // Predicated region
    $region66: #{vit_forward.1} parent=1 // pred_check
      _
    $region67: #{vit_forward.1} parent=1 // pred_check_branch
      %59 = sbr.rel (0) target = $region69
    $region68: #{vit_forward.1} parent=1 // pred_region
      _
    $region69: #{vit_forward.1} parent=1 // pred_fallthru
      _
    // Predicated region
    $region70: #{vit_forward.1} parent=1 // pred_check
      _
    $region71: #{vit_forward.1} parent=1 // pred_check_branch
      %61 = sbr.rel (0) target = $region73
    $region72: #{vit_forward.1} parent=1 // pred_region
      _
    $region73: #{vit_forward.1} parent=1 // pred_fallthru
      _
    // Predicated region
    $region74: #{vit_forward.1} parent=1 // pred_check
      _
    $region75: #{vit_forward.1} parent=1 // pred_check_branch
      %63 = sbr.rel (0) target = $region77
    $region76: #{vit_forward.1} parent=1 // pred_region
      _
    $region77: #{vit_forward.1} parent=1 // pred_fallthru
      _
    // Predicated region
    $region78: #{vit_forward.1} parent=1 // pred_check
      _
    $region79: #{vit_forward.1} parent=1 // pred_check_branch
      %65 = sbr.rel (0) target = $region81
    $region80: #{vit_forward.1} parent=1 // pred_region
      _
    $region81: #{vit_forward.1} parent=1 // pred_fallthru
      _
    %v67 = vld [vmem:[%s2] sm:$0x1]
    %v69 = vlaneseq
    %v70 = vshrl.u32 %v69, 7
    %v71 = vsub.s32 0, %v70
    %v72 = vrot.slane %v67, %v71
    %vm74 = vcmask 254976
    %75 = vst.msk [vmem:[#allocation2] sm:$0x3] %vm74, %v72
    %v76 = vld [vmem:[%s0] sm:$0xff]
    %v77 = vld [vmem:[%s0 + $0x8] sm:$0xff]
    %v78 = vld [vmem:[%s0 + $0x10] sm:$0xff]
    %v79 = vld [vmem:[%s1] sm:$0xf]
    %v80 = vld [vmem:[%s1 + $0x4] sm:$0xf]
    %v81 = vld [vmem:[%s1 + $0x8] sm:$0xf]
    %v82 = vld [vmem:[%s1 + $0xc] sm:$0xf]
    %v83 = vld [vmem:[%s1 + $0x10] sm:$0xf]
    %v84 = vld [vmem:[%s1 + $0x14] sm:$0xf]
    %v85 = vld [vmem:[%s1 + $0x18] sm:$0xf]
    %v86 = vld [vmem:[%s1 + $0x1c] sm:$0xf]
    %v87 = vld [vmem:[%s1 + $0x20] sm:$0xf]
    %v88 = vld [vmem:[%s1 + $0x24] sm:$0xf]
    %v89 = vld [vmem:[%s1 + $0x28] sm:$0xf]
    %v90 = vld [vmem:[%s1 + $0x2c] sm:$0xf]
    %v91 = vld [vmem:[%s1 + $0x30] sm:$0xf]
    %v92 = vld [vmem:[%s1 + $0x34] sm:$0xf]
    %v93 = vld [vmem:[%s1 + $0x38] sm:$0xf]
    %v94 = vld [vmem:[%s1 + $0x3c] sm:$0xf]
    %v95 = vld [vmem:[%s1 + $0x40] sm:$0xf]
    %v96 = vld [vmem:[%s1 + $0x44] sm:$0xf]
    %v97 = vld [vmem:[%s1 + $0x48] sm:$0xf]
    %v98 = vld [vmem:[%s1 + $0x4c] sm:$0xf]
    %v99 = vld [vmem:[%s1 + $0x50] sm:$0xf]
    %v100 = vld [vmem:[%s1 + $0x54] sm:$0xf]
    %v101 = vld [vmem:[%s1 + $0x58] sm:$0xf]
    %v102 = vld [vmem:[%s1 + $0x5c] sm:$0xf]
    %v103 = vld [vmem:[%s1 + $0x60] sm:$0xf]
    %v104 = vld [vmem:[%s1 + $0x64] sm:$0xf]
    %v105 = vld [vmem:[%s1 + $0x68] sm:$0xf]
    %v106 = vld [vmem:[%s1 + $0x6c] sm:$0xf]
    %v107 = vld [vmem:[%s1 + $0x70] sm:$0xf]
    %v108 = vld [vmem:[%s1 + $0x74] sm:$0xf]
    %v109 = vld [vmem:[%s1 + $0x78] sm:$0xf]
    %v110 = vld [vmem:[%s1 + $0x7c] sm:$0xf]
    %v111 = vld [vmem:[%s1 + $0x80] sm:$0xf]
    %v112 = vld [vmem:[%s1 + $0x84] sm:$0xf]
    %v113 = vld [vmem:[%s1 + $0x88] sm:$0xf]
    %v114 = vld [vmem:[%s1 + $0x8c] sm:$0xf]
    %v115 = vld [vmem:[%s1 + $0x90] sm:$0xf]
    %v116 = vld [vmem:[%s1 + $0x94] sm:$0xf]
    %v117 = vld [vmem:[%s1 + $0x98] sm:$0xf]
    %v118 = vld [vmem:[%s1 + $0x9c] sm:$0xf]
    %v119 = vld [vmem:[%s1 + $0xa0] sm:$0xf]
    %v120 = vld [vmem:[%s1 + $0xa4] sm:$0xf]
    %v121 = vld [vmem:[%s1 + $0xa8] sm:$0xf]
    %v122 = vld [vmem:[%s1 + $0xac] sm:$0xf]
    %v123 = vld [vmem:[%s1 + $0xb0] sm:$0xf]
    %v124 = vld [vmem:[%s1 + $0xb4] sm:$0xf]
    %v125 = vld [vmem:[%s1 + $0xb8] sm:$0xf]
    %v126 = vld [vmem:[%s1 + $0xbc] sm:$0xf]
    %v127 = vld [vmem:[%s1 + $0xc0] sm:$0xf]
    %v128 = vld [vmem:[%s1 + $0xc4] sm:$0xf]
    %v129 = vld [vmem:[%s1 + $0xc8] sm:$0xf]
    %v130 = vld [vmem:[%s1 + $0xcc] sm:$0xf]
    %v131 = vld [vmem:[%s1 + $0xd0] sm:$0xf]
    %v132 = vld [vmem:[%s1 + $0xd4] sm:$0xf]
    %v133 = vld [vmem:[%s1 + $0xd8] sm:$0xf]
    %v134 = vld [vmem:[%s1 + $0xdc] sm:$0xf]
    %v135 = vld [vmem:[%s1 + $0xe0] sm:$0xf]
    %v136 = vld [vmem:[%s1 + $0xe4] sm:$0xf]
    %v137 = vld [vmem:[%s1 + $0xe8] sm:$0xf]
    %v138 = vld [vmem:[%s1 + $0xec] sm:$0xf]
    %v139 = vld [vmem:[%s1 + $0xf0] sm:$0xf]
    %v140 = vld [vmem:[%s1 + $0xf4] sm:$0xf]
    %v141 = vld [vmem:[%s1 + $0xf8] sm:$0xf]
    %v142 = vld [vmem:[%s1 + $0xfc] sm:$0xf]
    %v143 = vld [vmem:[%s1 + $0x100] sm:$0xf]
    %v144 = vld [vmem:[%s1 + $0x104] sm:$0xf]
    %v145 = vld [vmem:[%s1 + $0x108] sm:$0xf]
    %v146 = vld [vmem:[%s1 + $0x10c] sm:$0xf]
    %v147 = vld [vmem:[%s1 + $0x110] sm:$0xf]
    %v148 = vld [vmem:[%s1 + $0x114] sm:$0xf]
    %v149 = vld [vmem:[%s1 + $0x118] sm:$0xf]
    %v150 = vld [vmem:[%s1 + $0x11c] sm:$0xf]
    %v151 = vld [vmem:[%s1 + $0x120] sm:$0xf]
    %v152 = vld [vmem:[%s1 + $0x124] sm:$0xf]
    %v153 = vld [vmem:[%s1 + $0x128] sm:$0xf]
    %v154 = vld [vmem:[%s1 + $0x12c] sm:$0xf]
    %v155 = vld [vmem:[%s1 + $0x130] sm:$0xf]
    %v156 = vld [vmem:[%s1 + $0x134] sm:$0xf]
    %v157 = vld [vmem:[%s1 + $0x138] sm:$0xf]
    %v158 = vld [vmem:[%s1 + $0x13c] sm:$0xf]
    %v159 = vld [vmem:[%s1 + $0x140] sm:$0xf]
    %v160 = vld [vmem:[%s1 + $0x144] sm:$0xf]
    %v161 = vld [vmem:[%s1 + $0x148] sm:$0xf]
    %v162 = vld [vmem:[%s1 + $0x14c] sm:$0xf]
    %v163 = vld [vmem:[%s1 + $0x150] sm:$0xf]
    %v164 = vld [vmem:[%s1 + $0x154] sm:$0xf]
    %v165 = vld [vmem:[%s1 + $0x158] sm:$0xf]
    %v166 = vld [vmem:[%s1 + $0x15c] sm:$0xf]
    %v167 = vld [vmem:[%s1 + $0x160] sm:$0xf]
    %v168 = vld [vmem:[%s1 + $0x164] sm:$0xf]
    %v169 = vld [vmem:[%s1 + $0x168] sm:$0xf]
    %v170 = vld [vmem:[%s1 + $0x16c] sm:$0xf]
    %v171 = vld [vmem:[%s1 + $0x170] sm:$0xf]
    %v172 = vld [vmem:[%s1 + $0x174] sm:$0xf]
    %v173 = vld [vmem:[%s1 + $0x178] sm:$0xf]
    %v174 = vld [vmem:[%s1 + $0x17c] sm:$0xf]
    %v175 = vld [vmem:[%s3] sm:$0xff]
    %v179 = vunpack.c.l.b16 %v76
    %v180 = vunpack.c.h.b16 %v76
    %v181 = vunpack.c.l.b16 %v77
    %v182 = vunpack.c.h.b16 %v77
    %v183 = vunpack.c.l.b16 %v78
    %v184 = vunpack.c.h.b16 %v78
    %v185 = vpack.c.b16 %v179, %v179
    %v186 = vpack.c.b16 %v180, %v180
    %v187 = vpack.c.b16 %v181, %v181
    %v188 = vpack.c.b16 %v182, %v182
    %v189 = vpack.c.b16 %v183, %v183
    %v190 = vpack.c.b16 %v184, %v184
    %v293 = vunpack.c.l.b16 %v79
    %v294 = vunpack.c.l.b16 %v80
    %v295 = vunpack.c.l.b16 %v81
    %v296 = vunpack.c.l.b16 %v82
    %v297 = vunpack.c.l.b16 %v83
    %v298 = vunpack.c.l.b16 %v84
    %v299 = vunpack.c.l.b16 %v85
    %v300 = vunpack.c.l.b16 %v86
    %v301 = vunpack.c.l.b16 %v87
    %v302 = vunpack.c.l.b16 %v88
    %v303 = vunpack.c.l.b16 %v89
    %v304 = vunpack.c.l.b16 %v90
    %v305 = vunpack.c.l.b16 %v91
    %v306 = vunpack.c.l.b16 %v92
    %v307 = vunpack.c.l.b16 %v93
    %v308 = vunpack.c.l.b16 %v94
    %v309 = vunpack.c.l.b16 %v95
    %v310 = vunpack.c.l.b16 %v96
    %v311 = vunpack.c.l.b16 %v97
    %v312 = vunpack.c.l.b16 %v98
    %v313 = vunpack.c.l.b16 %v99
    %v314 = vunpack.c.l.b16 %v100
    %v315 = vunpack.c.l.b16 %v101
    %v316 = vunpack.c.l.b16 %v102
    %v317 = vunpack.c.l.b16 %v103
    %v318 = vunpack.c.l.b16 %v104
    %v319 = vunpack.c.l.b16 %v105
    %v320 = vunpack.c.l.b16 %v106
    %v321 = vunpack.c.l.b16 %v107
    %v322 = vunpack.c.l.b16 %v108
    %v323 = vunpack.c.l.b16 %v109
    %v324 = vunpack.c.l.b16 %v110
    %v325 = vunpack.c.l.b16 %v111
    %v326 = vunpack.c.l.b16 %v112
    %v327 = vunpack.c.l.b16 %v113
    %v328 = vunpack.c.l.b16 %v114
    %v329 = vunpack.c.l.b16 %v115
    %v330 = vunpack.c.l.b16 %v116
    %v331 = vunpack.c.l.b16 %v117
    %v332 = vunpack.c.l.b16 %v118
    %v333 = vunpack.c.l.b16 %v119
    %v334 = vunpack.c.l.b16 %v120
    %v335 = vunpack.c.l.b16 %v121
    %v336 = vunpack.c.l.b16 %v122
    %v337 = vunpack.c.l.b16 %v123
    %v338 = vunpack.c.l.b16 %v124
    %v339 = vunpack.c.l.b16 %v125
    %v340 = vunpack.c.l.b16 %v126
    %v341 = vunpack.c.l.b16 %v127
    %v342 = vunpack.c.l.b16 %v128
    %v343 = vunpack.c.l.b16 %v129
    %v344 = vunpack.c.l.b16 %v130
    %v345 = vunpack.c.l.b16 %v131
    %v346 = vunpack.c.l.b16 %v132
    %v347 = vunpack.c.l.b16 %v133
    %v348 = vunpack.c.l.b16 %v134
    %v349 = vunpack.c.l.b16 %v135
    %v350 = vunpack.c.l.b16 %v136
    %v351 = vunpack.c.l.b16 %v137
    %v352 = vunpack.c.l.b16 %v138
    %v353 = vunpack.c.l.b16 %v139
    %v354 = vunpack.c.l.b16 %v140
    %v355 = vunpack.c.l.b16 %v141
    %v356 = vunpack.c.l.b16 %v142
    %v357 = vunpack.c.l.b16 %v143
    %v358 = vunpack.c.l.b16 %v144
    %v359 = vunpack.c.l.b16 %v145
    %v360 = vunpack.c.l.b16 %v146
    %v361 = vunpack.c.l.b16 %v147
    %v362 = vunpack.c.l.b16 %v148
    %v363 = vunpack.c.l.b16 %v149
    %v364 = vunpack.c.l.b16 %v150
    %v365 = vunpack.c.l.b16 %v151
    %v366 = vunpack.c.l.b16 %v152
    %v367 = vunpack.c.l.b16 %v153
    %v368 = vunpack.c.l.b16 %v154
    %v369 = vunpack.c.l.b16 %v155
    %v370 = vunpack.c.l.b16 %v156
    %v371 = vunpack.c.l.b16 %v157
    %v372 = vunpack.c.l.b16 %v158
    %v373 = vunpack.c.l.b16 %v159
    %v374 = vunpack.c.l.b16 %v160
    %v375 = vunpack.c.l.b16 %v161
    %v376 = vunpack.c.l.b16 %v162
    %v377 = vunpack.c.l.b16 %v163
    %v378 = vunpack.c.l.b16 %v164
    %v379 = vunpack.c.l.b16 %v165
    %v380 = vunpack.c.l.b16 %v166
    %v381 = vunpack.c.l.b16 %v167
    %v382 = vunpack.c.l.b16 %v168
    %v383 = vunpack.c.l.b16 %v169
    %v384 = vunpack.c.l.b16 %v170
    %v385 = vunpack.c.l.b16 %v171
    %v386 = vunpack.c.l.b16 %v172
    %v387 = vunpack.c.l.b16 %v173
    %v388 = vunpack.c.l.b16 %v174
    %v389 = vpack.c.b16 %v294, %v293
    %v390 = vpack.c.b16 %v296, %v295
    %v391 = vpack.c.b16 %v298, %v297
    %v392 = vpack.c.b16 %v300, %v299
    %v393 = vpack.c.b16 %v302, %v301
    %v394 = vpack.c.b16 %v304, %v303
    %v395 = vpack.c.b16 %v306, %v305
    %v396 = vpack.c.b16 %v308, %v307
    %v397 = vpack.c.b16 %v310, %v309
    %v398 = vpack.c.b16 %v312, %v311
    %v399 = vpack.c.b16 %v314, %v313
    %v400 = vpack.c.b16 %v316, %v315
    %v401 = vpack.c.b16 %v318, %v317
    %v402 = vpack.c.b16 %v320, %v319
    %v403 = vpack.c.b16 %v322, %v321
    %v404 = vpack.c.b16 %v324, %v323
    %v405 = vpack.c.b16 %v326, %v325
    %v406 = vpack.c.b16 %v328, %v327
    %v407 = vpack.c.b16 %v330, %v329
    %v408 = vpack.c.b16 %v332, %v331
    %v409 = vpack.c.b16 %v334, %v333
    %v410 = vpack.c.b16 %v336, %v335
    %v411 = vpack.c.b16 %v338, %v337
    %v412 = vpack.c.b16 %v340, %v339
    %v413 = vpack.c.b16 %v342, %v341
    %v414 = vpack.c.b16 %v344, %v343
    %v415 = vpack.c.b16 %v346, %v345
    %v416 = vpack.c.b16 %v348, %v347
    %v417 = vpack.c.b16 %v350, %v349
    %v418 = vpack.c.b16 %v352, %v351
    %v419 = vpack.c.b16 %v354, %v353
    %v420 = vpack.c.b16 %v356, %v355
    %v421 = vpack.c.b16 %v358, %v357
    %v422 = vpack.c.b16 %v360, %v359
    %v423 = vpack.c.b16 %v362, %v361
    %v424 = vpack.c.b16 %v364, %v363
    %v425 = vpack.c.b16 %v366, %v365
    %v426 = vpack.c.b16 %v368, %v367
    %v427 = vpack.c.b16 %v370, %v369
    %v428 = vpack.c.b16 %v372, %v371
    %v429 = vpack.c.b16 %v374, %v373
    %v430 = vpack.c.b16 %v376, %v375
    %v431 = vpack.c.b16 %v378, %v377
    %v432 = vpack.c.b16 %v380, %v379
    %v433 = vpack.c.b16 %v382, %v381
    %v434 = vpack.c.b16 %v384, %v383
    %v435 = vpack.c.b16 %v386, %v385
    %v436 = vpack.c.b16 %v388, %v387
    %485 = vmatprep.subr.bf16.mxu0 0
    %486 = vmatpush1.bf16.msra.mxu0 %v389
    %487 = vmatprep.subr.bf16.mxu0 0
    %488 = vmatpush1.bf16.msra.mxu0 %v390
    %489 = vmatprep.subr.bf16.mxu0 0
    %490 = vmatpush1.bf16.msra.mxu0 %v391
    %491 = vmatprep.subr.bf16.mxu0 0
    %492 = vmatpush1.bf16.msra.mxu0 %v392
    %493 = vmatprep.subr.bf16.mxu0 0
    %494 = vmatpush1.bf16.msra.mxu0 %v393
    %495 = vmatprep.subr.bf16.mxu0 0
    %496 = vmatpush1.bf16.msra.mxu0 %v394
    %497 = vmatprep.subr.bf16.mxu0 0
    %498 = vmatpush1.bf16.msra.mxu0 %v395
    %499 = vmatprep.subr.bf16.mxu0 0
    %500 = vmatpush1.bf16.msra.mxu0 %v396
    %501 = vmatprep.subr.bf16.mxu0 0
    %502 = vmatpush1.bf16.msra.mxu0 %v397
    %503 = vmatprep.subr.bf16.mxu0 0
    %504 = vmatpush1.bf16.msra.mxu0 %v398
    %505 = vmatprep.subr.bf16.mxu0 0
    %506 = vmatpush1.bf16.msra.mxu0 %v399
    %507 = vmatprep.subr.bf16.mxu0 0
    %508 = vmatpush1.bf16.msra.mxu0 %v400
    %509 = vmatprep.subr.bf16.mxu0 0
    %510 = vmatpush1.bf16.msra.mxu0 %v401
    %511 = vmatprep.subr.bf16.mxu0 0
    %512 = vmatpush1.bf16.msra.mxu0 %v402
    %513 = vmatprep.subr.bf16.mxu0 0
    %514 = vmatpush1.bf16.msra.mxu0 %v403
    %515 = vmatprep.subr.bf16.mxu0 0
    %516 = vmatpush1.bf16.msra.mxu0 %v404
    %517 = vmatprep.mubr.bf16.mxu0 %v186
    %518 = vmatmul.mubr.bf16.gmra.mrb[0].mxu0 %v185
    %v519 = vpop.f32.mrb[0].mxu0
    %v520 = vadd.f32 %v175, %v519
    %v521 = vpop.f32.mrb[0].mxu0
    %v522 = vpop.f32.mrb[0].mxu0
    %v523 = vpop.f32.mrb[0].mxu0
    %524 = vdwg.mxu0
    %525 = vmatprep.subr.bf16.mxu0 0
    %526 = vmatpush1.bf16.msra.mxu0 %v405
    %527 = vmatprep.subr.bf16.mxu0 0
    %528 = vmatpush1.bf16.msra.mxu0 %v406
    %529 = vmatprep.subr.bf16.mxu0 0
    %530 = vmatpush1.bf16.msra.mxu0 %v407
    %531 = vmatprep.subr.bf16.mxu0 0
    %532 = vmatpush1.bf16.msra.mxu0 %v408
    %533 = vmatprep.subr.bf16.mxu0 0
    %534 = vmatpush1.bf16.msra.mxu0 %v409
    %535 = vmatprep.subr.bf16.mxu0 0
    %536 = vmatpush1.bf16.msra.mxu0 %v410
    %537 = vmatprep.subr.bf16.mxu0 0
    %538 = vmatpush1.bf16.msra.mxu0 %v411
    %539 = vmatprep.subr.bf16.mxu0 0
    %540 = vmatpush1.bf16.msra.mxu0 %v412
    %541 = vmatprep.subr.bf16.mxu0 0
    %542 = vmatpush1.bf16.msra.mxu0 %v413
    %543 = vmatprep.subr.bf16.mxu0 0
    %544 = vmatpush1.bf16.msra.mxu0 %v414
    %545 = vmatprep.subr.bf16.mxu0 0
    %546 = vmatpush1.bf16.msra.mxu0 %v415
    %547 = vmatprep.subr.bf16.mxu0 0
    %548 = vmatpush1.bf16.msra.mxu0 %v416
    %549 = vmatprep.subr.bf16.mxu0 0
    %550 = vmatpush1.bf16.msra.mxu0 %v417
    %551 = vmatprep.subr.bf16.mxu0 0
    %552 = vmatpush1.bf16.msra.mxu0 %v418
    %553 = vmatprep.subr.bf16.mxu0 0
    %554 = vmatpush1.bf16.msra.mxu0 %v419
    %555 = vmatprep.subr.bf16.mxu0 0
    %556 = vmatpush1.bf16.msra.mxu0 %v420
    %557 = vmatprep.mubr.bf16.mxu0 %v188
    %558 = vmatmul.mubr.bf16.gmra.mrb[0].mxu0 %v187
    %v559 = vpop.f32.mrb[0].mxu0
    %v560 = vadd.f32 %v520, %v559
    %v561 = vpop.f32.mrb[0].mxu0
    %v562 = vpop.f32.mrb[0].mxu0
    %v563 = vpop.f32.mrb[0].mxu0
    %564 = vdwg.mxu0
    %565 = vmatprep.subr.bf16.mxu0 0
    %566 = vmatpush1.bf16.msra.mxu0 %v421
    %567 = vmatprep.subr.bf16.mxu0 0
    %568 = vmatpush1.bf16.msra.mxu0 %v422
    %569 = vmatprep.subr.bf16.mxu0 0
    %570 = vmatpush1.bf16.msra.mxu0 %v423
    %571 = vmatprep.subr.bf16.mxu0 0
    %572 = vmatpush1.bf16.msra.mxu0 %v424
    %573 = vmatprep.subr.bf16.mxu0 0
    %574 = vmatpush1.bf16.msra.mxu0 %v425
    %575 = vmatprep.subr.bf16.mxu0 0
    %576 = vmatpush1.bf16.msra.mxu0 %v426
    %577 = vmatprep.subr.bf16.mxu0 0
    %578 = vmatpush1.bf16.msra.mxu0 %v427
    %579 = vmatprep.subr.bf16.mxu0 0
    %580 = vmatpush1.bf16.msra.mxu0 %v428
    %581 = vmatprep.subr.bf16.mxu0 0
    %582 = vmatpush1.bf16.msra.mxu0 %v429
    %583 = vmatprep.subr.bf16.mxu0 0
    %584 = vmatpush1.bf16.msra.mxu0 %v430
    %585 = vmatprep.subr.bf16.mxu0 0
    %586 = vmatpush1.bf16.msra.mxu0 %v431
    %587 = vmatprep.subr.bf16.mxu0 0
    %588 = vmatpush1.bf16.msra.mxu0 %v432
    %589 = vmatprep.subr.bf16.mxu0 0
    %590 = vmatpush1.bf16.msra.mxu0 %v433
    %591 = vmatprep.subr.bf16.mxu0 0
    %592 = vmatpush1.bf16.msra.mxu0 %v434
    %593 = vmatprep.subr.bf16.mxu0 0
    %594 = vmatpush1.bf16.msra.mxu0 %v435
    %595 = vmatprep.subr.bf16.mxu0 0
    %596 = vmatpush1.bf16.msra.mxu0 %v436
    %597 = vmatprep.mubr.bf16.mxu0 %v190
    %598 = vmatmul.mubr.bf16.gmra.mrb[0].mxu0 %v189
    %v599 = vpop.f32.mrb[0].mxu0
    %v600 = vadd.f32 %v560, %v599
    %v601 = vpop.f32.mrb[0].mxu0
    %v602 = vpop.f32.mrb[0].mxu0
    %v603 = vpop.f32.mrb[0].mxu0
    %604 = vdwg.mxu0
    %vm605 = vcmask 261120
    %606 = vst.msk [vmem:[#allocation2 + $0x2] sm:$0xff] %vm605, %v600
    %v607 = vld [vmem:[#allocation2] sm:$0xff]
    %v608 = vld [vmem:[#allocation2 + $0x8] sm:$0x3]
    %v609 = vlaneseq
    %v610 = vshrl.u32 %v609, 7
    %v611 = vadd.s32 %v610, 8
    %v612 = vcvt.s32.f32 %v610
    %v613 = vcvt.s32.f32 %v611
    %v614 = vlaneseq
    %v615 = vand.u32 %v614, 127
    %v616 = vcvt.s32.f32 %v615
    %vm617 = vcmp.lt.f32.partialorder %v612, 2.0
    %vm618 = vcmp.lt.f32.partialorder %v613, 2.0
    %v619 = vsub.f32 %v612, 2.0
    %v620 = vsub.f32 %v613, 2.0
    %v621 = vmul.f32 %v619, 0.25
    %v622 = vmul.f32 %v620, 0.25
    %v623 = vfloor.f32 %v621
    %v624 = vfloor.f32 %v622
    %v625 = vsel %vm617, %v612, %v623
    %v626 = vsel %vm618, %v613, %v624
    %vm627 = vcmp.lt.f32.partialorder %v616, 2.0
    %v628 = vsub.f32 %v616, 2.0
    %v629 = vmul.f32 %v628, 0.25
    %v630 = vfloor.f32 %v629
    %v631 = vsel %vm627, %v616, %v630
    %vm632 = vcmp.eq.f32.partialorder %v625, %v631
    %vm633 = vcmp.eq.f32.partialorder %v626, %v631
    %v634 = vsel %vm632, 0.0, -1e+30
    %v635 = vsel %vm633, 0.0, -1e+30
    %v636 = vld [vmem:[%s4] sm:$0x1]
    %v637 = vld [vmem:[%s5] sm:$0x1]
    %v638 = vsel %vm605, %v607, 0.0
    %639 = vadd.xlane.f32.xlu0 %v638
    %v640 = vpop.xlane.xlu0 %639
    %v641 = vsel %vm74, %v608, 0.0
    %642 = vadd.xlane.f32.xlu0 %v641
    %v643 = vpop.xlane.xlu0 %642
    %v644 = vrcp.pop 32.0
    %v645 = vmul.f32 %v640, %v644
    %v646 = vmul.f32 %v643, %v644
    %v647 = vsub.f32 %v607, %v645
    %v648 = vsub.f32 %v608, %v646
    %v649 = vmul.f32 %v647, %v647
    %v650 = vmul.f32 %v648, %v648
    %v651 = vsel %vm605, %v649, 0.0
    %652 = vadd.xlane.f32.xlu0 %v651
    %v653 = vpop.xlane.xlu0 %652
    %v654 = vsel %vm74, %v650, 0.0
    %655 = vadd.xlane.f32.xlu0 %v654
    %v656 = vpop.xlane.xlu0 %655
    %v657 = vmul.f32 %v653, %v644
    %v658 = vmul.f32 %v656, %v644
    %v659 = vadd.f32 %v657, 1e-12
    %v660 = vadd.f32 %v658, 1e-12
    %v661 = vrsqrt.pop %v659
    %v662 = vrsqrt.pop %v660
    %v663 = vmul.f32 %v647, %v661
    %v664 = vmul.f32 %v648, %v662
    %v666 = vlaneseq
    %v667 = vshrl.u32 %v666, 7
    %v668 = vsub.s32 0, %v667
    %v669 = vrot.slane %v636, %v668
    %v671 = vmul.f32 %v663, %v669
    %v672 = vmul.f32 %v664, %v669
    %v674 = vlaneseq
    %v675 = vshrl.u32 %v674, 7
    %v676 = vsub.s32 0, %v675
    %v677 = vrot.slane %v637, %v676
    %v679 = vadd.f32 %v671, %v677
    %v680 = vadd.f32 %v672, %v677
    %v681 = vld [vmem:[%s6] sm:$0xf]
    %v682 = vld [vmem:[%s6 + $0x4] sm:$0xf]
    %v683 = vld [vmem:[%s6 + $0x8] sm:$0xf]
    %v684 = vld [vmem:[%s6 + $0xc] sm:$0xf]
    %v685 = vpack.c.bf16 %v680, %v679
    %v686 = vld [vmem:[%s7] sm:$0x1]
    %v688 = vlaneseq
    %v689 = vshrl.u32 %v688, 7
    %v690 = vsub.s32 0, %v689
    %v691 = vrot.slane %v686, %v690
    %v697 = vunpack.c.l.b16 %v681
    %v698 = vunpack.c.l.b16 %v682
    %v699 = vunpack.c.l.b16 %v683
    %v700 = vunpack.c.l.b16 %v684
    %v701 = vpack.c.b16 %v698, %v697
    %v702 = vpack.c.b16 %v700, %v699
    %v706 = vsel %vm605, %v685, 0
    %708 = vmatprep.subr.bf16.mxu0 0
    %709 = vmatpush1.bf16.msra.mxu0 %v701
    %710 = vmatprep.subr.bf16.mxu0 0
    %711 = vmatpush1.bf16.msra.mxu0 %v702
    %712 = vmatprep.subr.bf16.mxu0 0
    %713 = vmatpush1.bf16.msra.mxu0 0
    %714 = vmatprep.subr.bf16.mxu0 0
    %715 = vmatpush1.bf16.msra.mxu0 0
    %716 = vmatprep.subr.bf16.mxu0 0
    %717 = vmatpush1.bf16.msra.mxu0 0
    %718 = vmatprep.subr.bf16.mxu0 0
    %719 = vmatpush1.bf16.msra.mxu0 0
    %720 = vmatprep.subr.bf16.mxu0 0
    %721 = vmatpush1.bf16.msra.mxu0 0
    %722 = vmatprep.subr.bf16.mxu0 0
    %723 = vmatpush1.bf16.msra.mxu0 0
    %724 = vmatprep.subr.bf16.mxu0 0
    %725 = vmatpush1.bf16.msra.mxu0 0
    %726 = vmatprep.subr.bf16.mxu0 0
    %727 = vmatpush1.bf16.msra.mxu0 0
    %728 = vmatprep.subr.bf16.mxu0 0
    %729 = vmatpush1.bf16.msra.mxu0 0
    %730 = vmatprep.subr.bf16.mxu0 0
    %731 = vmatpush1.bf16.msra.mxu0 0
    %732 = vmatprep.subr.bf16.mxu0 0
    %733 = vmatpush1.bf16.msra.mxu0 0
    %734 = vmatprep.subr.bf16.mxu0 0
    %735 = vmatpush1.bf16.msra.mxu0 0
    %736 = vmatprep.subr.bf16.mxu0 0
    %737 = vmatpush1.bf16.msra.mxu0 0
    %738 = vmatprep.subr.bf16.mxu0 0
    %739 = vmatpush1.bf16.msra.mxu0 0
    %740 = vmatprep.mubr.bf16.mxu0 0
    %741 = vmatmul.mubr.bf16.gmra.mrb[0].mxu0 %v706
    %v742 = vpop.f32.mrb[0].mxu0
    %v743 = vadd.f32 %v691, %v742
    %v744 = vpop.f32.mrb[0].mxu0
    %v745 = vpop.f32.mrb[0].mxu0
    %v746 = vadd.f32 %v691, %v745
    %v747 = vpop.f32.mrb[0].mxu0
    %748 = vdwg.mxu0
    %v749 = vpack.c.bf16 %v746, %v743
    %751 = vrot.lane.b32.xlu0 %v749, 96
    %v752 = vpop.permute.xlu0 %751
    %vm753 = vcmask 130048
    %v755 = vsel %vm753, %v749, 0
    %v758 = vsel %vm753, %v752, 0
    %760 = vmatprep.subr.bf16.mxu0 0
    %761 = vmatpush1.bf16.xpose.msra.mxu0 %v758
    %762 = vmatprep.subr.bf16.mxu0 0
    %763 = vmatpush1.bf16.xpose.msra.mxu0 0
    %764 = vmatprep.subr.bf16.mxu0 0
    %765 = vmatpush1.bf16.xpose.msra.mxu0 0
    %766 = vmatprep.subr.bf16.mxu0 0
    %767 = vmatpush1.bf16.xpose.msra.mxu0 0
    %768 = vmatprep.subr.bf16.mxu0 0
    %769 = vmatpush1.bf16.xpose.msra.mxu0 0
    %770 = vmatprep.subr.bf16.mxu0 0
    %771 = vmatpush1.bf16.xpose.msra.mxu0 0
    %772 = vmatprep.subr.bf16.mxu0 0
    %773 = vmatpush1.bf16.xpose.msra.mxu0 0
    %774 = vmatprep.subr.bf16.mxu0 0
    %775 = vmatpush1.bf16.xpose.msra.mxu0 0
    %776 = vmatprep.subr.bf16.mxu0 0
    %777 = vmatpush1.bf16.xpose.msra.mxu0 0
    %778 = vmatprep.subr.bf16.mxu0 0
    %779 = vmatpush1.bf16.xpose.msra.mxu0 0
    %780 = vmatprep.subr.bf16.mxu0 0
    %781 = vmatpush1.bf16.xpose.msra.mxu0 0
    %782 = vmatprep.subr.bf16.mxu0 0
    %783 = vmatpush1.bf16.xpose.msra.mxu0 0
    %784 = vmatprep.subr.bf16.mxu0 0
    %785 = vmatpush1.bf16.xpose.msra.mxu0 0
    %786 = vmatprep.subr.bf16.mxu0 0
    %787 = vmatpush1.bf16.xpose.msra.mxu0 0
    %788 = vmatprep.subr.bf16.mxu0 0
    %789 = vmatpush1.bf16.xpose.msra.mxu0 0
    %790 = vmatprep.subr.bf16.mxu0 0
    %791 = vmatpush1.bf16.xpose.msra.mxu0 0
    %792 = vmatprep.mubr.bf16.mxu0 0
    %793 = vmatmul.mubr.bf16.gmra.mrb[0].mxu0 %v755
    %v794 = vpop.f32.mrb[0].mxu0
    %v795 = vadd.f32 0.0, %v794
    %v796 = vpop.f32.mrb[0].mxu0
    %v797 = vpop.f32.mrb[0].mxu0
    %v798 = vadd.f32 0.0, %v797
    %v799 = vpop.f32.mrb[0].mxu0
    %800 = vdwg.mxu0
    %v801 = vmul.f32 %v795, 0.25
    %v802 = vmul.f32 %v798, 0.25
    %v803 = vadd.f32 %v801, %v634
    %v804 = vadd.f32 %v802, %v635
    %vm805 = vcmask 80896
    %v806 = vsel %vm805, %v803, -inf
    %807 = vmax.xlane.f32.xlu0 %v806
    %v808 = vpop.xlane.xlu0 %807
    %vm809 = vcmask 74752
    %v810 = vsel %vm809, %v804, -inf
    %811 = vmax.xlane.f32.xlu0 %v810
    %v812 = vpop.xlane.xlu0 %811
    %v813 = vsub.f32 %v803, %v808
    %v814 = vsub.f32 %v804, %v812
    %v815 = vmul.f32 %v813, 1.442695
    %v816 = vpow.pop %v815
    %v817 = vmul.f32 %v814, 1.442695
    %v818 = vpow.pop %v817
    %v819 = vsel %vm805, %v816, 0.0
    %820 = vadd.xlane.f32.xlu0 %v819
    %v821 = vpop.xlane.xlu0 %820
    %v822 = vsel %vm809, %v818, 0.0
    %823 = vadd.xlane.f32.xlu0 %v822
    %v824 = vpop.xlane.xlu0 %823
    %v825 = vrcp.pop %v821
    %v826 = vrcp.pop %v824
    %v827 = vmul.f32 %v816, %v825
    %v828 = vmul.f32 %v818, %v826
    %v829 = vpack.c.bf16 %v828, %v827
    %830 = vrot.lane.b32.xlu0 %v749, 64
    %v831 = vpop.permute.xlu0 %830
    %v833 = vsel %vm805, %v829, 0
    %vm835 = vcmask 1044480
    %v837 = vsel %vm835, %v831, 0
    %839 = vmatprep.subr.bf16.mxu0 0
    %840 = vmatpush1.bf16.msra.mxu0 %v837
    %841 = vmatprep.subr.bf16.mxu0 0
    %842 = vmatpush1.bf16.msra.mxu0 0
    %843 = vmatprep.subr.bf16.mxu0 0
    %844 = vmatpush1.bf16.msra.mxu0 0
    %845 = vmatprep.subr.bf16.mxu0 0
    %846 = vmatpush1.bf16.msra.mxu0 0
    %847 = vmatprep.subr.bf16.mxu0 0
    %848 = vmatpush1.bf16.msra.mxu0 0
    %849 = vmatprep.subr.bf16.mxu0 0
    %850 = vmatpush1.bf16.msra.mxu0 0
    %851 = vmatprep.subr.bf16.mxu0 0
    %852 = vmatpush1.bf16.msra.mxu0 0
    %853 = vmatprep.subr.bf16.mxu0 0
    %854 = vmatpush1.bf16.msra.mxu0 0
    %855 = vmatprep.subr.bf16.mxu0 0
    %856 = vmatpush1.bf16.msra.mxu0 0
    %857 = vmatprep.subr.bf16.mxu0 0
    %858 = vmatpush1.bf16.msra.mxu0 0
    %859 = vmatprep.subr.bf16.mxu0 0
    %860 = vmatpush1.bf16.msra.mxu0 0
    %861 = vmatprep.subr.bf16.mxu0 0
    %862 = vmatpush1.bf16.msra.mxu0 0
    %863 = vmatprep.subr.bf16.mxu0 0
    %864 = vmatpush1.bf16.msra.mxu0 0
    %865 = vmatprep.subr.bf16.mxu0 0
    %866 = vmatpush1.bf16.msra.mxu0 0
    %867 = vmatprep.subr.bf16.mxu0 0
    %868 = vmatpush1.bf16.msra.mxu0 0
    %869 = vmatprep.subr.bf16.mxu0 0
    %870 = vmatpush1.bf16.msra.mxu0 0
    %871 = vmatprep.mubr.bf16.mxu0 0
    %872 = vmatmul.mubr.bf16.gmra.mrb[0].mxu0 %v833
    %v873 = vpop.f32.mrb[0].mxu0
    %v874 = vadd.f32 0.0, %v873
    %v875 = vpop.f32.mrb[0].mxu0
    %v876 = vpop.f32.mrb[0].mxu0
    %v877 = vadd.f32 0.0, %v876
    %v878 = vpop.f32.mrb[0].mxu0
    %879 = vdwg.mxu0
    %880 = vst.msk [vmem:[#allocation2] sm:$0xff] %vm753, %v874
    %vm881 = vcmask 123904
    %882 = vst.msk [vmem:[#allocation2 + $0x8] sm:$0x3] %vm881, %v877
    %883 = vrot.lane.b32.xlu0 %v749, 112
    %v884 = vpop.permute.xlu0 %883
    %885 = vrot.lane.b32.xlu0 %v749, 80
    %v886 = vpop.permute.xlu0 %885
    %v888 = vsel %vm753, %v884, 0
    %v891 = vsel %vm753, %v886, 0
    %893 = vmatprep.subr.bf16.mxu0 0
    %894 = vmatpush1.bf16.xpose.msra.mxu0 %v891
    %895 = vmatprep.subr.bf16.mxu0 0
    %896 = vmatpush1.bf16.xpose.msra.mxu0 0
    %897 = vmatprep.subr.bf16.mxu0 0
    %898 = vmatpush1.bf16.xpose.msra.mxu0 0
    %899 = vmatprep.subr.bf16.mxu0 0
    %900 = vmatpush1.bf16.xpose.msra.mxu0 0
    %901 = vmatprep.subr.bf16.mxu0 0
    %902 = vmatpush1.bf16.xpose.msra.mxu0 0
    %903 = vmatprep.subr.bf16.mxu0 0
    %904 = vmatpush1.bf16.xpose.msra.mxu0 0
    %905 = vmatprep.subr.bf16.mxu0 0
    %906 = vmatpush1.bf16.xpose.msra.mxu0 0
    %907 = vmatprep.subr.bf16.mxu0 0
    %908 = vmatpush1.bf16.xpose.msra.mxu0 0
    %909 = vmatprep.subr.bf16.mxu0 0
    %910 = vmatpush1.bf16.xpose.msra.mxu0 0
    %911 = vmatprep.subr.bf16.mxu0 0
    %912 = vmatpush1.bf16.xpose.msra.mxu0 0
    %913 = vmatprep.subr.bf16.mxu0 0
    %914 = vmatpush1.bf16.xpose.msra.mxu0 0
    %915 = vmatprep.subr.bf16.mxu0 0
    %916 = vmatpush1.bf16.xpose.msra.mxu0 0
    %917 = vmatprep.subr.bf16.mxu0 0
    %918 = vmatpush1.bf16.xpose.msra.mxu0 0
    %919 = vmatprep.subr.bf16.mxu0 0
    %920 = vmatpush1.bf16.xpose.msra.mxu0 0
    %921 = vmatprep.subr.bf16.mxu0 0
    %922 = vmatpush1.bf16.xpose.msra.mxu0 0
    %923 = vmatprep.subr.bf16.mxu0 0
    %924 = vmatpush1.bf16.xpose.msra.mxu0 0
    %925 = vmatprep.mubr.bf16.mxu0 0
    %926 = vmatmul.mubr.bf16.gmra.mrb[0].mxu0 %v888
    %v927 = vpop.f32.mrb[0].mxu0
    %v928 = vadd.f32 0.0, %v927
    %v929 = vpop.f32.mrb[0].mxu0
    %v930 = vpop.f32.mrb[0].mxu0
    %v931 = vadd.f32 0.0, %v930
    %v932 = vpop.f32.mrb[0].mxu0
    %933 = vdwg.mxu0
    %v934 = vmul.f32 %v928, 0.25
    %v935 = vmul.f32 %v931, 0.25
    %v936 = vadd.f32 %v934, %v634
    %v937 = vadd.f32 %v935, %v635
    %v938 = vsel %vm805, %v936, -inf
    %939 = vmax.xlane.f32.xlu0 %v938
    %v940 = vpop.xlane.xlu0 %939
    %v941 = vsel %vm809, %v937, -inf
    %942 = vmax.xlane.f32.xlu0 %v941
    %v943 = vpop.xlane.xlu0 %942
    %v944 = vsub.f32 %v936, %v940
    %v945 = vsub.f32 %v937, %v943
    %v946 = vmul.f32 %v944, 1.442695
    %v947 = vpow.pop %v946
    %v948 = vmul.f32 %v945, 1.442695
    %v949 = vpow.pop %v948
    %v950 = vsel %vm805, %v947, 0.0
    %951 = vadd.xlane.f32.xlu0 %v950
    %v952 = vpop.xlane.xlu0 %951
    %v953 = vsel %vm809, %v949, 0.0
    %954 = vadd.xlane.f32.xlu0 %v953
    %v955 = vpop.xlane.xlu0 %954
    %v956 = vrcp.pop %v952
    %v957 = vrcp.pop %v955
    %v958 = vmul.f32 %v947, %v956
    %v959 = vmul.f32 %v949, %v957
    %v960 = vpack.c.bf16 %v959, %v958
    %961 = vrot.lane.b32.xlu0 %v749, 48
    %v962 = vpop.permute.xlu0 %961
    %v964 = vsel %vm805, %v960, 0
    %v967 = vsel %vm835, %v962, 0
    %969 = vmatprep.subr.bf16.mxu0 0
    %970 = vmatpush1.bf16.msra.mxu0 %v967
    %971 = vmatprep.subr.bf16.mxu0 0
    %972 = vmatpush1.bf16.msra.mxu0 0
    %973 = vmatprep.subr.bf16.mxu0 0
    %974 = vmatpush1.bf16.msra.mxu0 0
    %975 = vmatprep.subr.bf16.mxu0 0
    %976 = vmatpush1.bf16.msra.mxu0 0
    %977 = vmatprep.subr.bf16.mxu0 0
    %978 = vmatpush1.bf16.msra.mxu0 0
    %979 = vmatprep.subr.bf16.mxu0 0
    %980 = vmatpush1.bf16.msra.mxu0 0
    %981 = vmatprep.subr.bf16.mxu0 0
    %982 = vmatpush1.bf16.msra.mxu0 0
    %983 = vmatprep.subr.bf16.mxu0 0
    %984 = vmatpush1.bf16.msra.mxu0 0
    %985 = vmatprep.subr.bf16.mxu0 0
    %986 = vmatpush1.bf16.msra.mxu0 0
    %987 = vmatprep.subr.bf16.mxu0 0
    %988 = vmatpush1.bf16.msra.mxu0 0
    %989 = vmatprep.subr.bf16.mxu0 0
    %990 = vmatpush1.bf16.msra.mxu0 0
    %991 = vmatprep.subr.bf16.mxu0 0
    %992 = vmatpush1.bf16.msra.mxu0 0
    %993 = vmatprep.subr.bf16.mxu0 0
    %994 = vmatpush1.bf16.msra.mxu0 0
    %995 = vmatprep.subr.bf16.mxu0 0
    %996 = vmatpush1.bf16.msra.mxu0 0
    %997 = vmatprep.subr.bf16.mxu0 0
    %998 = vmatpush1.bf16.msra.mxu0 0
    %999 = vmatprep.subr.bf16.mxu0 0
    %1000 = vmatpush1.bf16.msra.mxu0 0
    %1001 = vmatprep.mubr.bf16.mxu0 0
    %1002 = vmatmul.mubr.bf16.gmra.mrb[0].mxu0 %v964
    %v1003 = vpop.f32.mrb[0].mxu0
    %v1004 = vadd.f32 0.0, %v1003
    %v1005 = vpop.f32.mrb[0].mxu0
    %v1006 = vpop.f32.mrb[0].mxu0
    %v1007 = vadd.f32 0.0, %v1006
    %v1008 = vpop.f32.mrb[0].mxu0
    %1009 = vdwg.mxu0
    %1012 = vrot.lane.b32.xlu0 %v1004, 16
    %v1013 = vpop.permute.xlu0 %1012
    %1014 = vrot.lane.b32.xlu0 %v1007, 16
    %v1015 = vpop.permute.xlu0 %1014
    %vm1018 = vcmask 261248
    %1019 = vst.msk [vmem:[#allocation2] sm:$0xff] %vm1018, %v1013
    %vm1020 = vcmask 255104
    %1021 = vst.msk [vmem:[#allocation2 + $0x8] sm:$0x3] %vm1020, %v1015
    %v1022 = vld [vmem:[#allocation2] sm:$0xff]
    %v1023 = vld [vmem:[#allocation2 + $0x8] sm:$0x3]
    %v1024 = vld [vmem:[%s8] sm:$0xf]
    %v1025 = vld [vmem:[%s8 + $0x4] sm:$0xf]
    %v1026 = vld [vmem:[%s8 + $0x8] sm:$0xf]
    %v1027 = vld [vmem:[%s8 + $0xc] sm:$0xf]
    %v1028 = vpack.c.bf16 %v1023, %v1022
    %v1029 = vld [vmem:[%s9] sm:$0x1]
    %v1031 = vlaneseq
    %v1032 = vshrl.u32 %v1031, 7
    %v1033 = vsub.s32 0, %v1032
    %v1034 = vrot.slane %v1029, %v1033
    %v1040 = vunpack.c.l.b16 %v1024
    %v1041 = vunpack.c.l.b16 %v1025
    %v1042 = vunpack.c.l.b16 %v1026
    %v1043 = vunpack.c.l.b16 %v1027
    %v1044 = vpack.c.b16 %v1041, %v1040
    %v1045 = vpack.c.b16 %v1043, %v1042
    %v1049 = vsel %vm605, %v1028, 0
    %1051 = vmatprep.subr.bf16.mxu0 0
    %1052 = vmatpush1.bf16.msra.mxu0 %v1044
    %1053 = vmatprep.subr.bf16.mxu0 0
    %1054 = vmatpush1.bf16.msra.mxu0 %v1045
    %1055 = vmatprep.subr.bf16.mxu0 0
    %1056 = vmatpush1.bf16.msra.mxu0 0
    %1057 = vmatprep.subr.bf16.mxu0 0
    %1058 = vmatpush1.bf16.msra.mxu0 0
    %1059 = vmatprep.subr.bf16.mxu0 0
    %1060 = vmatpush1.bf16.msra.mxu0 0
    %1061 = vmatprep.subr.bf16.mxu0 0
    %1062 = vmatpush1.bf16.msra.mxu0 0
    %1063 = vmatprep.subr.bf16.mxu0 0
    %1064 = vmatpush1.bf16.msra.mxu0 0
    %1065 = vmatprep.subr.bf16.mxu0 0
    %1066 = vmatpush1.bf16.msra.mxu0 0
    %1067 = vmatprep.subr.bf16.mxu0 0
    %1068 = vmatpush1.bf16.msra.mxu0 0
    %1069 = vmatprep.subr.bf16.mxu0 0
    %1070 = vmatpush1.bf16.msra.mxu0 0
    %1071 = vmatprep.subr.bf16.mxu0 0
    %1072 = vmatpush1.bf16.msra.mxu0 0
    %1073 = vmatprep.subr.bf16.mxu0 0
    %1074 = vmatpush1.bf16.msra.mxu0 0
    %1075 = vmatprep.subr.bf16.mxu0 0
    %1076 = vmatpush1.bf16.msra.mxu0 0
    %1077 = vmatprep.subr.bf16.mxu0 0
    %1078 = vmatpush1.bf16.msra.mxu0 0
    %1079 = vmatprep.subr.bf16.mxu0 0
    %1080 = vmatpush1.bf16.msra.mxu0 0
    %1081 = vmatprep.subr.bf16.mxu0 0
    %1082 = vmatpush1.bf16.msra.mxu0 0
    %1083 = vmatprep.mubr.bf16.mxu0 0
    %1084 = vmatmul.mubr.bf16.gmra.mrb[0].mxu0 %v1049
    %v1085 = vpop.f32.mrb[0].mxu0
    %v1086 = vadd.f32 %v1034, %v1085
    %v1087 = vpop.f32.mrb[0].mxu0
    %v1088 = vpop.f32.mrb[0].mxu0
    %v1089 = vadd.f32 %v1034, %v1088
    %v1090 = vpop.f32.mrb[0].mxu0
    %1091 = vdwg.mxu0
    %v1092 = vadd.f32 %v607, %v1086
    %v1093 = vadd.f32 %v608, %v1089
    %v1094 = vld [vmem:[%s10] sm:$0x1]
    %v1095 = vld [vmem:[%s11] sm:$0x1]
    %v1096 = vsel %vm605, %v1092, 0.0
    %1097 = vadd.xlane.f32.xlu0 %v1096
    %v1098 = vpop.xlane.xlu0 %1097
    %v1099 = vsel %vm74, %v1093, 0.0
    %1100 = vadd.xlane.f32.xlu0 %v1099
    %v1101 = vpop.xlane.xlu0 %1100
    %v1102 = vmul.f32 %v1098, %v644
    %v1103 = vmul.f32 %v1101, %v644
    %v1104 = vsub.f32 %v1092, %v1102
    %v1105 = vsub.f32 %v1093, %v1103
    %v1106 = vmul.f32 %v1104, %v1104
    %v1107 = vmul.f32 %v1105, %v1105
    %v1108 = vsel %vm605, %v1106, 0.0
    %1109 = vadd.xlane.f32.xlu0 %v1108
    %v1110 = vpop.xlane.xlu0 %1109
    %v1111 = vsel %vm74, %v1107, 0.0
    %1112 = vadd.xlane.f32.xlu0 %v1111
    %v1113 = vpop.xlane.xlu0 %1112
    %v1114 = vmul.f32 %v1110, %v644
    %v1115 = vmul.f32 %v1113, %v644
    %v1116 = vadd.f32 %v1114, 1e-12
    %v1117 = vadd.f32 %v1115, 1e-12
    %v1118 = vrsqrt.pop %v1116
    %v1119 = vrsqrt.pop %v1117
    %v1120 = vmul.f32 %v1104, %v1118
    %v1121 = vmul.f32 %v1105, %v1119
    %v1123 = vlaneseq
    %v1124 = vshrl.u32 %v1123, 7
    %v1125 = vsub.s32 0, %v1124
    %v1126 = vrot.slane %v1094, %v1125
    %v1128 = vmul.f32 %v1120, %v1126
    %v1129 = vmul.f32 %v1121, %v1126
    %v1131 = vlaneseq
    %v1132 = vshrl.u32 %v1131, 7
    %v1133 = vsub.s32 0, %v1132
    %v1134 = vrot.slane %v1095, %v1133
    %v1136 = vadd.f32 %v1128, %v1134
    %v1137 = vadd.f32 %v1129, %v1134
    %v1138 = vld [vmem:[%s12] sm:$0xf]
    %v1139 = vld [vmem:[%s12 + $0x4] sm:$0xf]
    %v1140 = vld [vmem:[%s12 + $0x8] sm:$0xf]
    %v1141 = vld [vmem:[%s12 + $0xc] sm:$0xf]
    %v1142 = vpack.c.bf16 %v1137, %v1136
    %v1143 = vld [vmem:[%s13] sm:$0x1]
    %v1145 = vlaneseq
    %v1146 = vshrl.u32 %v1145, 7
    %v1147 = vsub.s32 0, %v1146
    %v1148 = vrot.slane %v1143, %v1147
    %v1154 = vunpack.c.l.b16 %v1138
    %v1155 = vunpack.c.l.b16 %v1139
    %v1156 = vunpack.c.l.b16 %v1140
    %v1157 = vunpack.c.l.b16 %v1141
    %v1158 = vpack.c.b16 %v1155, %v1154
    %v1159 = vpack.c.b16 %v1157, %v1156
    %v1163 = vsel %vm605, %v1142, 0
    %1165 = vmatprep.subr.bf16.mxu0 0
    %1166 = vmatpush1.bf16.msra.mxu0 %v1158
    %1167 = vmatprep.subr.bf16.mxu0 0
    %1168 = vmatpush1.bf16.msra.mxu0 %v1159
    %1169 = vmatprep.subr.bf16.mxu0 0
    %1170 = vmatpush1.bf16.msra.mxu0 0
    %1171 = vmatprep.subr.bf16.mxu0 0
    %1172 = vmatpush1.bf16.msra.mxu0 0
    %1173 = vmatprep.subr.bf16.mxu0 0
    %1174 = vmatpush1.bf16.msra.mxu0 0
    %1175 = vmatprep.subr.bf16.mxu0 0
    %1176 = vmatpush1.bf16.msra.mxu0 0
    %1177 = vmatprep.subr.bf16.mxu0 0
    %1178 = vmatpush1.bf16.msra.mxu0 0
    %1179 = vmatprep.subr.bf16.mxu0 0
    %1180 = vmatpush1.bf16.msra.mxu0 0
    %1181 = vmatprep.subr.bf16.mxu0 0
    %1182 = vmatpush1.bf16.msra.mxu0 0
    %1183 = vmatprep.subr.bf16.mxu0 0
    %1184 = vmatpush1.bf16.msra.mxu0 0
    %1185 = vmatprep.subr.bf16.mxu0 0
    %1186 = vmatpush1.bf16.msra.mxu0 0
    %1187 = vmatprep.subr.bf16.mxu0 0
    %1188 = vmatpush1.bf16.msra.mxu0 0
    %1189 = vmatprep.subr.bf16.mxu0 0
    %1190 = vmatpush1.bf16.msra.mxu0 0
    %1191 = vmatprep.subr.bf16.mxu0 0
    %1192 = vmatpush1.bf16.msra.mxu0 0
    %1193 = vmatprep.subr.bf16.mxu0 0
    %1194 = vmatpush1.bf16.msra.mxu0 0
    %1195 = vmatprep.subr.bf16.mxu0 0
    %1196 = vmatpush1.bf16.msra.mxu0 0
    %1197 = vmatprep.mubr.bf16.mxu0 0
    %1198 = vmatmul.mubr.bf16.gmra.mrb[0].mxu0 %v1163
    %v1199 = vpop.f32.mrb[0].mxu0
    %v1200 = vadd.f32 %v1148, %v1199
    %v1201 = vpop.f32.mrb[0].mxu0
    %v1202 = vpop.f32.mrb[0].mxu0
    %v1203 = vadd.f32 %v1148, %v1202
    %v1204 = vpop.f32.mrb[0].mxu0
    %1205 = vdwg.mxu0
    %v1206 = vmul.f32 %v1200, %v1200
    %v1207 = vmul.f32 %v1203, %v1203
    %v1208 = vmul.f32 %v1200, %v1206
    %v1209 = vmul.f32 %v1203, %v1207
    %v1210 = vmul.f32 %v1208, 0.044715
    %v1211 = vmul.f32 %v1209, 0.044715
    %v1212 = vadd.f32 %v1200, %v1210
    %v1213 = vadd.f32 %v1203, %v1211
    %v1214 = vmul.f32 %v1212, 0.7978846
    %v1215 = vmul.f32 %v1213, 0.7978846
    %v1216 = vtanh.pop %v1214
    %v1217 = vtanh.pop %v1215
    %v1218 = vadd.f32 %v1216, 1.0
    %v1219 = vadd.f32 %v1217, 1.0
    %v1220 = vmul.f32 %v1218, 0.5
    %v1221 = vmul.f32 %v1219, 0.5
    %v1222 = vmul.f32 %v1200, %v1220
    %v1223 = vmul.f32 %v1203, %v1221
    %v1224 = vld [vmem:[%s14] sm:$0xf]
    %v1225 = vld [vmem:[%s14 + $0x4] sm:$0xf]
    %v1226 = vld [vmem:[%s14 + $0x8] sm:$0xf]
    %v1227 = vld [vmem:[%s14 + $0xc] sm:$0xf]
    %v1228 = vld [vmem:[%s14 + $0x10] sm:$0xf]
    %v1229 = vld [vmem:[%s14 + $0x14] sm:$0xf]
    %v1230 = vld [vmem:[%s14 + $0x18] sm:$0xf]
    %v1231 = vld [vmem:[%s14 + $0x1c] sm:$0xf]
    %v1232 = vld [vmem:[%s14 + $0x20] sm:$0xf]
    %v1233 = vld [vmem:[%s14 + $0x24] sm:$0xf]
    %v1234 = vld [vmem:[%s14 + $0x28] sm:$0xf]
    %v1235 = vld [vmem:[%s14 + $0x2c] sm:$0xf]
    %v1236 = vld [vmem:[%s14 + $0x30] sm:$0xf]
    %v1237 = vld [vmem:[%s14 + $0x34] sm:$0xf]
    %v1238 = vld [vmem:[%s14 + $0x38] sm:$0xf]
    %v1239 = vld [vmem:[%s14 + $0x3c] sm:$0xf]
    %v1240 = vpack.c.bf16 %v1223, %v1222
    %v1241 = vld [vmem:[%s15] sm:$0x1]
    %v1243 = vlaneseq
    %v1244 = vshrl.u32 %v1243, 7
    %v1245 = vsub.s32 0, %v1244
    %v1246 = vrot.slane %v1241, %v1245
    %v1264 = vunpack.c.l.b16 %v1224
    %v1265 = vunpack.c.l.b16 %v1225
    %v1266 = vunpack.c.l.b16 %v1226
    %v1267 = vunpack.c.l.b16 %v1227
    %v1268 = vunpack.c.l.b16 %v1228
    %v1269 = vunpack.c.l.b16 %v1229
    %v1270 = vunpack.c.l.b16 %v1230
    %v1271 = vunpack.c.l.b16 %v1231
    %v1272 = vunpack.c.l.b16 %v1232
    %v1273 = vunpack.c.l.b16 %v1233
    %v1274 = vunpack.c.l.b16 %v1234
    %v1275 = vunpack.c.l.b16 %v1235
    %v1276 = vunpack.c.l.b16 %v1236
    %v1277 = vunpack.c.l.b16 %v1237
    %v1278 = vunpack.c.l.b16 %v1238
    %v1279 = vunpack.c.l.b16 %v1239
    %v1280 = vpack.c.b16 %v1265, %v1264
    %v1281 = vpack.c.b16 %v1267, %v1266
    %v1282 = vpack.c.b16 %v1269, %v1268
    %v1283 = vpack.c.b16 %v1271, %v1270
    %v1284 = vpack.c.b16 %v1273, %v1272
    %v1285 = vpack.c.b16 %v1275, %v1274
    %v1286 = vpack.c.b16 %v1277, %v1276
    %v1287 = vpack.c.b16 %v1279, %v1278
    %1296 = vmatprep.subr.bf16.mxu0 0
    %1297 = vmatpush1.bf16.msra.mxu0 %v1280
    %1298 = vmatprep.subr.bf16.mxu0 0
    %1299 = vmatpush1.bf16.msra.mxu0 %v1281
    %1300 = vmatprep.subr.bf16.mxu0 0
    %1301 = vmatpush1.bf16.msra.mxu0 %v1282
    %1302 = vmatprep.subr.bf16.mxu0 0
    %1303 = vmatpush1.bf16.msra.mxu0 %v1283
    %1304 = vmatprep.subr.bf16.mxu0 0
    %1305 = vmatpush1.bf16.msra.mxu0 %v1284
    %1306 = vmatprep.subr.bf16.mxu0 0
    %1307 = vmatpush1.bf16.msra.mxu0 %v1285
    %1308 = vmatprep.subr.bf16.mxu0 0
    %1309 = vmatpush1.bf16.msra.mxu0 %v1286
    %1310 = vmatprep.subr.bf16.mxu0 0
    %1311 = vmatpush1.bf16.msra.mxu0 %v1287
    %1312 = vmatprep.subr.bf16.mxu0 0
    %1313 = vmatpush1.bf16.msra.mxu0 0
    %1314 = vmatprep.subr.bf16.mxu0 0
    %1315 = vmatpush1.bf16.msra.mxu0 0
    %1316 = vmatprep.subr.bf16.mxu0 0
    %1317 = vmatpush1.bf16.msra.mxu0 0
    %1318 = vmatprep.subr.bf16.mxu0 0
    %1319 = vmatpush1.bf16.msra.mxu0 0
    %1320 = vmatprep.subr.bf16.mxu0 0
    %1321 = vmatpush1.bf16.msra.mxu0 0
    %1322 = vmatprep.subr.bf16.mxu0 0
    %1323 = vmatpush1.bf16.msra.mxu0 0
    %1324 = vmatprep.subr.bf16.mxu0 0
    %1325 = vmatpush1.bf16.msra.mxu0 0
    %1326 = vmatprep.subr.bf16.mxu0 0
    %1327 = vmatpush1.bf16.msra.mxu0 0
    %1328 = vmatprep.mubr.bf16.mxu0 0
    %1329 = vmatmul.mubr.bf16.gmra.mrb[0].mxu0 %v1240
    %v1330 = vpop.f32.mrb[0].mxu0
    %v1331 = vadd.f32 %v1246, %v1330
    %v1332 = vpop.f32.mrb[0].mxu0
    %v1333 = vpop.f32.mrb[0].mxu0
    %v1334 = vadd.f32 %v1246, %v1333
    %v1335 = vpop.f32.mrb[0].mxu0
    %1336 = vdwg.mxu0
    %v1337 = vadd.f32 %v1092, %v1331
    %v1338 = vadd.f32 %v1093, %v1334
    %s1339 = scalar_lea.vmem %s4, 1
    %v1340 = vld [vmem:[%s1339] sm:$0x1]
    %s1341 = scalar_lea.vmem %s5, 1
    %v1342 = vld [vmem:[%s1341] sm:$0x1]
    %v1343 = vsel %vm605, %v1337, 0.0
    %1344 = vadd.xlane.f32.xlu0 %v1343
    %v1345 = vpop.xlane.xlu0 %1344
    %v1346 = vsel %vm74, %v1338, 0.0
    %1347 = vadd.xlane.f32.xlu0 %v1346
    %v1348 = vpop.xlane.xlu0 %1347
    %v1349 = vmul.f32 %v1345, %v644
    %v1350 = vmul.f32 %v1348, %v644
    %v1351 = vsub.f32 %v1337, %v1349
    %v1352 = vsub.f32 %v1338, %v1350
    %v1353 = vmul.f32 %v1351, %v1351
    %v1354 = vmul.f32 %v1352, %v1352
    %v1355 = vsel %vm605, %v1353, 0.0
    %1356 = vadd.xlane.f32.xlu0 %v1355
    %v1357 = vpop.xlane.xlu0 %1356
    %v1358 = vsel %vm74, %v1354, 0.0
    %1359 = vadd.xlane.f32.xlu0 %v1358
    %v1360 = vpop.xlane.xlu0 %1359
    %v1361 = vmul.f32 %v1357, %v644
    %v1362 = vmul.f32 %v1360, %v644
    %v1363 = vadd.f32 %v1361, 1e-12
    %v1364 = vadd.f32 %v1362, 1e-12
    %v1365 = vrsqrt.pop %v1363
    %v1366 = vrsqrt.pop %v1364
    %v1367 = vmul.f32 %v1351, %v1365
    %v1368 = vmul.f32 %v1352, %v1366
    %v1370 = vlaneseq
    %v1371 = vshrl.u32 %v1370, 7
    %v1372 = vsub.s32 0, %v1371
    %v1373 = vrot.slane %v1340, %v1372
    %v1375 = vmul.f32 %v1367, %v1373
    %v1376 = vmul.f32 %v1368, %v1373
    %v1378 = vlaneseq
    %v1379 = vshrl.u32 %v1378, 7
    %v1380 = vsub.s32 0, %v1379
    %v1381 = vrot.slane %v1342, %v1380
    %v1383 = vadd.f32 %v1375, %v1381
    %v1384 = vadd.f32 %v1376, %v1381
    %s1385 = scalar_lea.vmem %s6, 16
    %v1386 = vld [vmem:[%s1385] sm:$0xf]
    %v1387 = vld [vmem:[%s1385 + $0x4] sm:$0xf]
    %v1388 = vld [vmem:[%s1385 + $0x8] sm:$0xf]
    %v1389 = vld [vmem:[%s1385 + $0xc] sm:$0xf]
    %v1390 = vpack.c.bf16 %v1384, %v1383
    %s1391 = scalar_lea.vmem %s7, 1
    %v1392 = vld [vmem:[%s1391] sm:$0x1]
    %v1394 = vlaneseq
    %v1395 = vshrl.u32 %v1394, 7
    %v1396 = vsub.s32 0, %v1395
    %v1397 = vrot.slane %v1392, %v1396
    %v1403 = vunpack.c.l.b16 %v1386
    %v1404 = vunpack.c.l.b16 %v1387
    %v1405 = vunpack.c.l.b16 %v1388
    %v1406 = vunpack.c.l.b16 %v1389
    %v1407 = vpack.c.b16 %v1404, %v1403
    %v1408 = vpack.c.b16 %v1406, %v1405
    %v1412 = vsel %vm605, %v1390, 0
    %1414 = vmatprep.subr.bf16.mxu0 0
    %1415 = vmatpush1.bf16.msra.mxu0 %v1407
    %1416 = vmatprep.subr.bf16.mxu0 0
    %1417 = vmatpush1.bf16.msra.mxu0 %v1408
    %1418 = vmatprep.subr.bf16.mxu0 0
    %1419 = vmatpush1.bf16.msra.mxu0 0
    %1420 = vmatprep.subr.bf16.mxu0 0
    %1421 = vmatpush1.bf16.msra.mxu0 0
    %1422 = vmatprep.subr.bf16.mxu0 0
    %1423 = vmatpush1.bf16.msra.mxu0 0
    %1424 = vmatprep.subr.bf16.mxu0 0
    %1425 = vmatpush1.bf16.msra.mxu0 0
    %1426 = vmatprep.subr.bf16.mxu0 0
    %1427 = vmatpush1.bf16.msra.mxu0 0
    %1428 = vmatprep.subr.bf16.mxu0 0
    %1429 = vmatpush1.bf16.msra.mxu0 0
    %1430 = vmatprep.subr.bf16.mxu0 0
    %1431 = vmatpush1.bf16.msra.mxu0 0
    %1432 = vmatprep.subr.bf16.mxu0 0
    %1433 = vmatpush1.bf16.msra.mxu0 0
    %1434 = vmatprep.subr.bf16.mxu0 0
    %1435 = vmatpush1.bf16.msra.mxu0 0
    %1436 = vmatprep.subr.bf16.mxu0 0
    %1437 = vmatpush1.bf16.msra.mxu0 0
    %1438 = vmatprep.subr.bf16.mxu0 0
    %1439 = vmatpush1.bf16.msra.mxu0 0
    %1440 = vmatprep.subr.bf16.mxu0 0
    %1441 = vmatpush1.bf16.msra.mxu0 0
    %1442 = vmatprep.subr.bf16.mxu0 0
    %1443 = vmatpush1.bf16.msra.mxu0 0
    %1444 = vmatprep.subr.bf16.mxu0 0
    %1445 = vmatpush1.bf16.msra.mxu0 0
    %1446 = vmatprep.mubr.bf16.mxu0 0
    %1447 = vmatmul.mubr.bf16.gmra.mrb[0].mxu0 %v1412
    %v1448 = vpop.f32.mrb[0].mxu0
    %v1449 = vadd.f32 %v1397, %v1448
    %v1450 = vpop.f32.mrb[0].mxu0
    %v1451 = vpop.f32.mrb[0].mxu0
    %v1452 = vadd.f32 %v1397, %v1451
    %v1453 = vpop.f32.mrb[0].mxu0
    %1454 = vdwg.mxu0
    %v1455 = vpack.c.bf16 %v1452, %v1449
    %1457 = vrot.lane.b32.xlu0 %v1455, 96
    %v1458 = vpop.permute.xlu0 %1457
    %v1460 = vsel %vm753, %v1455, 0
    %v1463 = vsel %vm753, %v1458, 0
    %1465 = vmatprep.subr.bf16.mxu0 0
    %1466 = vmatpush1.bf16.xpose.msra.mxu0 %v1463
    %1467 = vmatprep.subr.bf16.mxu0 0
    %1468 = vmatpush1.bf16.xpose.msra.mxu0 0
    %1469 = vmatprep.subr.bf16.mxu0 0
    %1470 = vmatpush1.bf16.xpose.msra.mxu0 0
    %1471 = vmatprep.subr.bf16.mxu0 0
    %1472 = vmatpush1.bf16.xpose.msra.mxu0 0
    %1473 = vmatprep.subr.bf16.mxu0 0
    %1474 = vmatpush1.bf16.xpose.msra.mxu0 0
    %1475 = vmatprep.subr.bf16.mxu0 0
    %1476 = vmatpush1.bf16.xpose.msra.mxu0 0
    %1477 = vmatprep.subr.bf16.mxu0 0
    %1478 = vmatpush1.bf16.xpose.msra.mxu0 0
    %1479 = vmatprep.subr.bf16.mxu0 0
    %1480 = vmatpush1.bf16.xpose.msra.mxu0 0
    %1481 = vmatprep.subr.bf16.mxu0 0
    %1482 = vmatpush1.bf16.xpose.msra.mxu0 0
    %1483 = vmatprep.subr.bf16.mxu0 0
    %1484 = vmatpush1.bf16.xpose.msra.mxu0 0
    %1485 = vmatprep.subr.bf16.mxu0 0
    %1486 = vmatpush1.bf16.xpose.msra.mxu0 0
    %1487 = vmatprep.subr.bf16.mxu0 0
    %1488 = vmatpush1.bf16.xpose.msra.mxu0 0
    %1489 = vmatprep.subr.bf16.mxu0 0
    %1490 = vmatpush1.bf16.xpose.msra.mxu0 0
    %1491 = vmatprep.subr.bf16.mxu0 0
    %1492 = vmatpush1.bf16.xpose.msra.mxu0 0
    %1493 = vmatprep.subr.bf16.mxu0 0
    %1494 = vmatpush1.bf16.xpose.msra.mxu0 0
    %1495 = vmatprep.subr.bf16.mxu0 0
    %1496 = vmatpush1.bf16.xpose.msra.mxu0 0
    %1497 = vmatprep.mubr.bf16.mxu0 0
    %1498 = vmatmul.mubr.bf16.gmra.mrb[0].mxu0 %v1460
    %v1499 = vpop.f32.mrb[0].mxu0
    %v1500 = vadd.f32 0.0, %v1499
    %v1501 = vpop.f32.mrb[0].mxu0
    %v1502 = vpop.f32.mrb[0].mxu0
    %v1503 = vadd.f32 0.0, %v1502
    %v1504 = vpop.f32.mrb[0].mxu0
    %1505 = vdwg.mxu0
    %v1506 = vmul.f32 %v1500, 0.25
    %v1507 = vmul.f32 %v1503, 0.25
    %v1508 = vadd.f32 %v1506, %v634
    %v1509 = vadd.f32 %v1507, %v635
    %v1510 = vsel %vm805, %v1508, -inf
    %1511 = vmax.xlane.f32.xlu0 %v1510
    %v1512 = vpop.xlane.xlu0 %1511
    %v1513 = vsel %vm809, %v1509, -inf
    %1514 = vmax.xlane.f32.xlu0 %v1513
    %v1515 = vpop.xlane.xlu0 %1514
    %v1516 = vsub.f32 %v1508, %v1512
    %v1517 = vsub.f32 %v1509, %v1515
    %v1518 = vmul.f32 %v1516, 1.442695
    %v1519 = vpow.pop %v1518
    %v1520 = vmul.f32 %v1517, 1.442695
    %v1521 = vpow.pop %v1520
    %v1522 = vsel %vm805, %v1519, 0.0
    %1523 = vadd.xlane.f32.xlu0 %v1522
    %v1524 = vpop.xlane.xlu0 %1523
    %v1525 = vsel %vm809, %v1521, 0.0
    %1526 = vadd.xlane.f32.xlu0 %v1525
    %v1527 = vpop.xlane.xlu0 %1526
    %v1528 = vrcp.pop %v1524
    %v1529 = vrcp.pop %v1527
    %v1530 = vmul.f32 %v1519, %v1528
    %v1531 = vmul.f32 %v1521, %v1529
    %v1532 = vpack.c.bf16 %v1531, %v1530
    %1533 = vrot.lane.b32.xlu0 %v1455, 64
    %v1534 = vpop.permute.xlu0 %1533
    %v1536 = vsel %vm805, %v1532, 0
    %v1539 = vsel %vm835, %v1534, 0
    %1541 = vmatprep.subr.bf16.mxu0 0
    %1542 = vmatpush1.bf16.msra.mxu0 %v1539
    %1543 = vmatprep.subr.bf16.mxu0 0
    %1544 = vmatpush1.bf16.msra.mxu0 0
    %1545 = vmatprep.subr.bf16.mxu0 0
    %1546 = vmatpush1.bf16.msra.mxu0 0
    %1547 = vmatprep.subr.bf16.mxu0 0
    %1548 = vmatpush1.bf16.msra.mxu0 0
    %1549 = vmatprep.subr.bf16.mxu0 0
    %1550 = vmatpush1.bf16.msra.mxu0 0
    %1551 = vmatprep.subr.bf16.mxu0 0
    %1552 = vmatpush1.bf16.msra.mxu0 0
    %1553 = vmatprep.subr.bf16.mxu0 0
    %1554 = vmatpush1.bf16.msra.mxu0 0
    %1555 = vmatprep.subr.bf16.mxu0 0
    %1556 = vmatpush1.bf16.msra.mxu0 0
    %1557 = vmatprep.subr.bf16.mxu0 0
    %1558 = vmatpush1.bf16.msra.mxu0 0
    %1559 = vmatprep.subr.bf16.mxu0 0
    %1560 = vmatpush1.bf16.msra.mxu0 0
    %1561 = vmatprep.subr.bf16.mxu0 0
    %1562 = vmatpush1.bf16.msra.mxu0 0
    %1563 = vmatprep.subr.bf16.mxu0 0
    %1564 = vmatpush1.bf16.msra.mxu0 0
    %1565 = vmatprep.subr.bf16.mxu0 0
    %1566 = vmatpush1.bf16.msra.mxu0 0
    %1567 = vmatprep.subr.bf16.mxu0 0
    %1568 = vmatpush1.bf16.msra.mxu0 0
    %1569 = vmatprep.subr.bf16.mxu0 0
    %1570 = vmatpush1.bf16.msra.mxu0 0
    %1571 = vmatprep.subr.bf16.mxu0 0
    %1572 = vmatpush1.bf16.msra.mxu0 0
    %1573 = vmatprep.mubr.bf16.mxu0 0
    %1574 = vmatmul.mubr.bf16.gmra.mrb[0].mxu0 %v1536
    %v1575 = vpop.f32.mrb[0].mxu0
    %v1576 = vadd.f32 0.0, %v1575
    %v1577 = vpop.f32.mrb[0].mxu0
    %v1578 = vpop.f32.mrb[0].mxu0
    %v1579 = vadd.f32 0.0, %v1578
    %v1580 = vpop.f32.mrb[0].mxu0
    %1581 = vdwg.mxu0
    %1582 = vst.msk [vmem:[#allocation2] sm:$0xff] %vm753, %v1576
    %1583 = vst.msk [vmem:[#allocation2 + $0x8] sm:$0x3] %vm881, %v1579
    %1584 = vrot.lane.b32.xlu0 %v1455, 112
    %v1585 = vpop.permute.xlu0 %1584
    %1586 = vrot.lane.b32.xlu0 %v1455, 80
    %v1587 = vpop.permute.xlu0 %1586
    %v1589 = vsel %vm753, %v1585, 0
    %v1592 = vsel %vm753, %v1587, 0
    %1594 = vmatprep.subr.bf16.mxu0 0
    %1595 = vmatpush1.bf16.xpose.msra.mxu0 %v1592
    %1596 = vmatprep.subr.bf16.mxu0 0
    %1597 = vmatpush1.bf16.xpose.msra.mxu0 0
    %1598 = vmatprep.subr.bf16.mxu0 0
    %1599 = vmatpush1.bf16.xpose.msra.mxu0 0
    %1600 = vmatprep.subr.bf16.mxu0 0
    %1601 = vmatpush1.bf16.xpose.msra.mxu0 0
    %1602 = vmatprep.subr.bf16.mxu0 0
    %1603 = vmatpush1.bf16.xpose.msra.mxu0 0
    %1604 = vmatprep.subr.bf16.mxu0 0
    %1605 = vmatpush1.bf16.xpose.msra.mxu0 0
    %1606 = vmatprep.subr.bf16.mxu0 0
    %1607 = vmatpush1.bf16.xpose.msra.mxu0 0
    %1608 = vmatprep.subr.bf16.mxu0 0
    %1609 = vmatpush1.bf16.xpose.msra.mxu0 0
    %1610 = vmatprep.subr.bf16.mxu0 0
    %1611 = vmatpush1.bf16.xpose.msra.mxu0 0
    %1612 = vmatprep.subr.bf16.mxu0 0
    %1613 = vmatpush1.bf16.xpose.msra.mxu0 0
    %1614 = vmatprep.subr.bf16.mxu0 0
    %1615 = vmatpush1.bf16.xpose.msra.mxu0 0
    %1616 = vmatprep.subr.bf16.mxu0 0
    %1617 = vmatpush1.bf16.xpose.msra.mxu0 0
    %1618 = vmatprep.subr.bf16.mxu0 0
    %1619 = vmatpush1.bf16.xpose.msra.mxu0 0
    %1620 = vmatprep.subr.bf16.mxu0 0
    %1621 = vmatpush1.bf16.xpose.msra.mxu0 0
    %1622 = vmatprep.subr.bf16.mxu0 0
    %1623 = vmatpush1.bf16.xpose.msra.mxu0 0
    %1624 = vmatprep.subr.bf16.mxu0 0
    %1625 = vmatpush1.bf16.xpose.msra.mxu0 0
    %1626 = vmatprep.mubr.bf16.mxu0 0
    %1627 = vmatmul.mubr.bf16.gmra.mrb[0].mxu0 %v1589
    %v1628 = vpop.f32.mrb[0].mxu0
    %v1629 = vadd.f32 0.0, %v1628
    %v1630 = vpop.f32.mrb[0].mxu0
    %v1631 = vpop.f32.mrb[0].mxu0
    %v1632 = vadd.f32 0.0, %v1631
    %v1633 = vpop.f32.mrb[0].mxu0
    %1634 = vdwg.mxu0
    %v1635 = vmul.f32 %v1629, 0.25
    %v1636 = vmul.f32 %v1632, 0.25
    %v1637 = vadd.f32 %v1635, %v634
    %v1638 = vadd.f32 %v1636, %v635
    %v1639 = vsel %vm805, %v1637, -inf
    %1640 = vmax.xlane.f32.xlu0 %v1639
    %v1641 = vpop.xlane.xlu0 %1640
    %v1642 = vsel %vm809, %v1638, -inf
    %1643 = vmax.xlane.f32.xlu0 %v1642
    %v1644 = vpop.xlane.xlu0 %1643
    %v1645 = vsub.f32 %v1637, %v1641
    %v1646 = vsub.f32 %v1638, %v1644
    %v1647 = vmul.f32 %v1645, 1.442695
    %v1648 = vpow.pop %v1647
    %v1649 = vmul.f32 %v1646, 1.442695
    %v1650 = vpow.pop %v1649
    %v1651 = vsel %vm805, %v1648, 0.0
    %1652 = vadd.xlane.f32.xlu0 %v1651
    %v1653 = vpop.xlane.xlu0 %1652
    %v1654 = vsel %vm809, %v1650, 0.0
    %1655 = vadd.xlane.f32.xlu0 %v1654
    %v1656 = vpop.xlane.xlu0 %1655
    %v1657 = vrcp.pop %v1653
    %v1658 = vrcp.pop %v1656
    %v1659 = vmul.f32 %v1648, %v1657
    %v1660 = vmul.f32 %v1650, %v1658
    %v1661 = vpack.c.bf16 %v1660, %v1659
    %1662 = vrot.lane.b32.xlu0 %v1455, 48
    %v1663 = vpop.permute.xlu0 %1662
    %v1665 = vsel %vm805, %v1661, 0
    %v1668 = vsel %vm835, %v1663, 0
    %1670 = vmatprep.subr.bf16.mxu0 0
    %1671 = vmatpush1.bf16.msra.mxu0 %v1668
    %1672 = vmatprep.subr.bf16.mxu0 0
    %1673 = vmatpush1.bf16.msra.mxu0 0
    %1674 = vmatprep.subr.bf16.mxu0 0
    %1675 = vmatpush1.bf16.msra.mxu0 0
    %1676 = vmatprep.subr.bf16.mxu0 0
    %1677 = vmatpush1.bf16.msra.mxu0 0
    %1678 = vmatprep.subr.bf16.mxu0 0
    %1679 = vmatpush1.bf16.msra.mxu0 0
    %1680 = vmatprep.subr.bf16.mxu0 0
    %1681 = vmatpush1.bf16.msra.mxu0 0
    %1682 = vmatprep.subr.bf16.mxu0 0
    %1683 = vmatpush1.bf16.msra.mxu0 0
    %1684 = vmatprep.subr.bf16.mxu0 0
    %1685 = vmatpush1.bf16.msra.mxu0 0
    %1686 = vmatprep.subr.bf16.mxu0 0
    %1687 = vmatpush1.bf16.msra.mxu0 0
    %1688 = vmatprep.subr.bf16.mxu0 0
    %1689 = vmatpush1.bf16.msra.mxu0 0
    %1690 = vmatprep.subr.bf16.mxu0 0
    %1691 = vmatpush1.bf16.msra.mxu0 0
    %1692 = vmatprep.subr.bf16.mxu0 0
    %1693 = vmatpush1.bf16.msra.mxu0 0
    %1694 = vmatprep.subr.bf16.mxu0 0
    %1695 = vmatpush1.bf16.msra.mxu0 0
    %1696 = vmatprep.subr.bf16.mxu0 0
    %1697 = vmatpush1.bf16.msra.mxu0 0
    %1698 = vmatprep.subr.bf16.mxu0 0
    %1699 = vmatpush1.bf16.msra.mxu0 0
    %1700 = vmatprep.subr.bf16.mxu0 0
    %1701 = vmatpush1.bf16.msra.mxu0 0
    %1702 = vmatprep.mubr.bf16.mxu0 0
    %1703 = vmatmul.mubr.bf16.gmra.mrb[0].mxu0 %v1665
    %v1704 = vpop.f32.mrb[0].mxu0
    %v1705 = vadd.f32 0.0, %v1704
    %v1706 = vpop.f32.mrb[0].mxu0
    %v1707 = vpop.f32.mrb[0].mxu0
    %v1708 = vadd.f32 0.0, %v1707
    %v1709 = vpop.f32.mrb[0].mxu0
    %1710 = vdwg.mxu0
    %1713 = vrot.lane.b32.xlu0 %v1705, 16
    %v1714 = vpop.permute.xlu0 %1713
    %1715 = vrot.lane.b32.xlu0 %v1708, 16
    %v1716 = vpop.permute.xlu0 %1715
    %1719 = vst.msk [vmem:[#allocation2] sm:$0xff] %vm1018, %v1714
    %1720 = vst.msk [vmem:[#allocation2 + $0x8] sm:$0x3] %vm1020, %v1716
    %v1721 = vld [vmem:[#allocation2] sm:$0xff]
    %v1722 = vld [vmem:[#allocation2 + $0x8] sm:$0x3]
    %s1723 = scalar_lea.vmem %s8, 16
    %v1724 = vld [vmem:[%s1723] sm:$0xf]
    %v1725 = vld [vmem:[%s1723 + $0x4] sm:$0xf]
    %v1726 = vld [vmem:[%s1723 + $0x8] sm:$0xf]
    %v1727 = vld [vmem:[%s1723 + $0xc] sm:$0xf]
    %v1728 = vpack.c.bf16 %v1722, %v1721
    %s1729 = scalar_lea.vmem %s9, 1
    %v1730 = vld [vmem:[%s1729] sm:$0x1]
    %v1732 = vlaneseq
    %v1733 = vshrl.u32 %v1732, 7
    %v1734 = vsub.s32 0, %v1733
    %v1735 = vrot.slane %v1730, %v1734
    %v1741 = vunpack.c.l.b16 %v1724
    %v1742 = vunpack.c.l.b16 %v1725
    %v1743 = vunpack.c.l.b16 %v1726
    %v1744 = vunpack.c.l.b16 %v1727
    %v1745 = vpack.c.b16 %v1742, %v1741
    %v1746 = vpack.c.b16 %v1744, %v1743
    %v1750 = vsel %vm605, %v1728, 0
    %1752 = vmatprep.subr.bf16.mxu0 0
    %1753 = vmatpush1.bf16.msra.mxu0 %v1745
    %1754 = vmatprep.subr.bf16.mxu0 0
    %1755 = vmatpush1.bf16.msra.mxu0 %v1746
    %1756 = vmatprep.subr.bf16.mxu0 0
    %1757 = vmatpush1.bf16.msra.mxu0 0
    %1758 = vmatprep.subr.bf16.mxu0 0
    %1759 = vmatpush1.bf16.msra.mxu0 0
    %1760 = vmatprep.subr.bf16.mxu0 0
    %1761 = vmatpush1.bf16.msra.mxu0 0
    %1762 = vmatprep.subr.bf16.mxu0 0
    %1763 = vmatpush1.bf16.msra.mxu0 0
    %1764 = vmatprep.subr.bf16.mxu0 0
    %1765 = vmatpush1.bf16.msra.mxu0 0
    %1766 = vmatprep.subr.bf16.mxu0 0
    %1767 = vmatpush1.bf16.msra.mxu0 0
    %1768 = vmatprep.subr.bf16.mxu0 0
    %1769 = vmatpush1.bf16.msra.mxu0 0
    %1770 = vmatprep.subr.bf16.mxu0 0
    %1771 = vmatpush1.bf16.msra.mxu0 0
    %1772 = vmatprep.subr.bf16.mxu0 0
    %1773 = vmatpush1.bf16.msra.mxu0 0
    %1774 = vmatprep.subr.bf16.mxu0 0
    %1775 = vmatpush1.bf16.msra.mxu0 0
    %1776 = vmatprep.subr.bf16.mxu0 0
    %1777 = vmatpush1.bf16.msra.mxu0 0
    %1778 = vmatprep.subr.bf16.mxu0 0
    %1779 = vmatpush1.bf16.msra.mxu0 0
    %1780 = vmatprep.subr.bf16.mxu0 0
    %1781 = vmatpush1.bf16.msra.mxu0 0
    %1782 = vmatprep.subr.bf16.mxu0 0
    %1783 = vmatpush1.bf16.msra.mxu0 0
    %1784 = vmatprep.mubr.bf16.mxu0 0
    %1785 = vmatmul.mubr.bf16.gmra.mrb[0].mxu0 %v1750
    %v1786 = vpop.f32.mrb[0].mxu0
    %v1787 = vadd.f32 %v1735, %v1786
    %v1788 = vpop.f32.mrb[0].mxu0
    %v1789 = vpop.f32.mrb[0].mxu0
    %v1790 = vadd.f32 %v1735, %v1789
    %v1791 = vpop.f32.mrb[0].mxu0
    %1792 = vdwg.mxu0
    %v1793 = vadd.f32 %v1337, %v1787
    %v1794 = vadd.f32 %v1338, %v1790
    %s1795 = scalar_lea.vmem %s10, 1
    %v1796 = vld [vmem:[%s1795] sm:$0x1]
    %s1797 = scalar_lea.vmem %s11, 1
    %v1798 = vld [vmem:[%s1797] sm:$0x1]
    %v1799 = vsel %vm605, %v1793, 0.0
    %1800 = vadd.xlane.f32.xlu0 %v1799
    %v1801 = vpop.xlane.xlu0 %1800
    %v1802 = vsel %vm74, %v1794, 0.0
    %1803 = vadd.xlane.f32.xlu0 %v1802
    %v1804 = vpop.xlane.xlu0 %1803
    %v1805 = vmul.f32 %v1801, %v644
    %v1806 = vmul.f32 %v1804, %v644
    %v1807 = vsub.f32 %v1793, %v1805
    %v1808 = vsub.f32 %v1794, %v1806
    %v1809 = vmul.f32 %v1807, %v1807
    %v1810 = vmul.f32 %v1808, %v1808
    %v1811 = vsel %vm605, %v1809, 0.0
    %1812 = vadd.xlane.f32.xlu0 %v1811
    %v1813 = vpop.xlane.xlu0 %1812
    %v1814 = vsel %vm74, %v1810, 0.0
    %1815 = vadd.xlane.f32.xlu0 %v1814
    %v1816 = vpop.xlane.xlu0 %1815
    %v1817 = vmul.f32 %v1813, %v644
    %v1818 = vmul.f32 %v1816, %v644
    %v1819 = vadd.f32 %v1817, 1e-12
    %v1820 = vadd.f32 %v1818, 1e-12
    %v1821 = vrsqrt.pop %v1819
    %v1822 = vrsqrt.pop %v1820
    %v1823 = vmul.f32 %v1807, %v1821
    %v1824 = vmul.f32 %v1808, %v1822
    %v1826 = vlaneseq
    %v1827 = vshrl.u32 %v1826, 7
    %v1828 = vsub.s32 0, %v1827
    %v1829 = vrot.slane %v1796, %v1828
    %v1831 = vmul.f32 %v1823, %v1829
    %v1832 = vmul.f32 %v1824, %v1829
    %v1834 = vlaneseq
    %v1835 = vshrl.u32 %v1834, 7
    %v1836 = vsub.s32 0, %v1835
    %v1837 = vrot.slane %v1798, %v1836
    %v1839 = vadd.f32 %v1831, %v1837
    %v1840 = vadd.f32 %v1832, %v1837
    %s1841 = scalar_lea.vmem %s12, 16
    %v1842 = vld [vmem:[%s1841] sm:$0xf]
    %v1843 = vld [vmem:[%s1841 + $0x4] sm:$0xf]
    %v1844 = vld [vmem:[%s1841 + $0x8] sm:$0xf]
    %v1845 = vld [vmem:[%s1841 + $0xc] sm:$0xf]
    %v1846 = vpack.c.bf16 %v1840, %v1839
    %s1847 = scalar_lea.vmem %s13, 1
    %v1848 = vld [vmem:[%s1847] sm:$0x1]
    %v1850 = vlaneseq
    %v1851 = vshrl.u32 %v1850, 7
    %v1852 = vsub.s32 0, %v1851
    %v1853 = vrot.slane %v1848, %v1852
    %v1859 = vunpack.c.l.b16 %v1842
    %v1860 = vunpack.c.l.b16 %v1843
    %v1861 = vunpack.c.l.b16 %v1844
    %v1862 = vunpack.c.l.b16 %v1845
    %v1863 = vpack.c.b16 %v1860, %v1859
    %v1864 = vpack.c.b16 %v1862, %v1861
    %v1868 = vsel %vm605, %v1846, 0
    %1870 = vmatprep.subr.bf16.mxu0 0
    %1871 = vmatpush1.bf16.msra.mxu0 %v1863
    %1872 = vmatprep.subr.bf16.mxu0 0
    %1873 = vmatpush1.bf16.msra.mxu0 %v1864
    %1874 = vmatprep.subr.bf16.mxu0 0
    %1875 = vmatpush1.bf16.msra.mxu0 0
    %1876 = vmatprep.subr.bf16.mxu0 0
    %1877 = vmatpush1.bf16.msra.mxu0 0
    %1878 = vmatprep.subr.bf16.mxu0 0
    %1879 = vmatpush1.bf16.msra.mxu0 0
    %1880 = vmatprep.subr.bf16.mxu0 0
    %1881 = vmatpush1.bf16.msra.mxu0 0
    %1882 = vmatprep.subr.bf16.mxu0 0
    %1883 = vmatpush1.bf16.msra.mxu0 0
    %1884 = vmatprep.subr.bf16.mxu0 0
    %1885 = vmatpush1.bf16.msra.mxu0 0
    %1886 = vmatprep.subr.bf16.mxu0 0
    %1887 = vmatpush1.bf16.msra.mxu0 0
    %1888 = vmatprep.subr.bf16.mxu0 0
    %1889 = vmatpush1.bf16.msra.mxu0 0
    %1890 = vmatprep.subr.bf16.mxu0 0
    %1891 = vmatpush1.bf16.msra.mxu0 0
    %1892 = vmatprep.subr.bf16.mxu0 0
    %1893 = vmatpush1.bf16.msra.mxu0 0
    %1894 = vmatprep.subr.bf16.mxu0 0
    %1895 = vmatpush1.bf16.msra.mxu0 0
    %1896 = vmatprep.subr.bf16.mxu0 0
    %1897 = vmatpush1.bf16.msra.mxu0 0
    %1898 = vmatprep.subr.bf16.mxu0 0
    %1899 = vmatpush1.bf16.msra.mxu0 0
    %1900 = vmatprep.subr.bf16.mxu0 0
    %1901 = vmatpush1.bf16.msra.mxu0 0
    %1902 = vmatprep.mubr.bf16.mxu0 0
    %1903 = vmatmul.mubr.bf16.gmra.mrb[0].mxu0 %v1868
    %v1904 = vpop.f32.mrb[0].mxu0
    %v1905 = vadd.f32 %v1853, %v1904
    %v1906 = vpop.f32.mrb[0].mxu0
    %v1907 = vpop.f32.mrb[0].mxu0
    %v1908 = vadd.f32 %v1853, %v1907
    %v1909 = vpop.f32.mrb[0].mxu0
    %1910 = vdwg.mxu0
    %v1911 = vmul.f32 %v1905, %v1905
    %v1912 = vmul.f32 %v1908, %v1908
    %v1913 = vmul.f32 %v1905, %v1911
    %v1914 = vmul.f32 %v1908, %v1912
    %v1915 = vmul.f32 %v1913, 0.044715
    %v1916 = vmul.f32 %v1914, 0.044715
    %v1917 = vadd.f32 %v1905, %v1915
    %v1918 = vadd.f32 %v1908, %v1916
    %v1919 = vmul.f32 %v1917, 0.7978846
    %v1920 = vmul.f32 %v1918, 0.7978846
    %v1921 = vtanh.pop %v1919
    %v1922 = vtanh.pop %v1920
    %v1923 = vadd.f32 %v1921, 1.0
    %v1924 = vadd.f32 %v1922, 1.0
    %v1925 = vmul.f32 %v1923, 0.5
    %v1926 = vmul.f32 %v1924, 0.5
    %v1927 = vmul.f32 %v1905, %v1925
    %v1928 = vmul.f32 %v1908, %v1926
    %s1929 = scalar_lea.vmem %s14, 64
    %v1930 = vld [vmem:[%s1929] sm:$0xf]
    %v1931 = vld [vmem:[%s1929 + $0x4] sm:$0xf]
    %v1932 = vld [vmem:[%s1929 + $0x8] sm:$0xf]
    %v1933 = vld [vmem:[%s1929 + $0xc] sm:$0xf]
    %v1934 = vld [vmem:[%s1929 + $0x10] sm:$0xf]
    %v1935 = vld [vmem:[%s1929 + $0x14] sm:$0xf]
    %v1936 = vld [vmem:[%s1929 + $0x18] sm:$0xf]
    %v1937 = vld [vmem:[%s1929 + $0x1c] sm:$0xf]
    %v1938 = vld [vmem:[%s1929 + $0x20] sm:$0xf]
    %v1939 = vld [vmem:[%s1929 + $0x24] sm:$0xf]
    %v1940 = vld [vmem:[%s1929 + $0x28] sm:$0xf]
    %v1941 = vld [vmem:[%s1929 + $0x2c] sm:$0xf]
    %v1942 = vld [vmem:[%s1929 + $0x30] sm:$0xf]
    %v1943 = vld [vmem:[%s1929 + $0x34] sm:$0xf]
    %v1944 = vld [vmem:[%s1929 + $0x38] sm:$0xf]
    %v1945 = vld [vmem:[%s1929 + $0x3c] sm:$0xf]
    %v1946 = vpack.c.bf16 %v1928, %v1927
    %s1947 = scalar_lea.vmem %s15, 1
    %v1948 = vld [vmem:[%s1947] sm:$0x1]
    %v1950 = vlaneseq
    %v1951 = vshrl.u32 %v1950, 7
    %v1952 = vsub.s32 0, %v1951
    %v1953 = vrot.slane %v1948, %v1952
    %v1971 = vunpack.c.l.b16 %v1930
    %v1972 = vunpack.c.l.b16 %v1931
    %v1973 = vunpack.c.l.b16 %v1932
    %v1974 = vunpack.c.l.b16 %v1933
    %v1975 = vunpack.c.l.b16 %v1934
    %v1976 = vunpack.c.l.b16 %v1935
    %v1977 = vunpack.c.l.b16 %v1936
    %v1978 = vunpack.c.l.b16 %v1937
    %v1979 = vunpack.c.l.b16 %v1938
    %v1980 = vunpack.c.l.b16 %v1939
    %v1981 = vunpack.c.l.b16 %v1940
    %v1982 = vunpack.c.l.b16 %v1941
    %v1983 = vunpack.c.l.b16 %v1942
    %v1984 = vunpack.c.l.b16 %v1943
    %v1985 = vunpack.c.l.b16 %v1944
    %v1986 = vunpack.c.l.b16 %v1945
    %v1987 = vpack.c.b16 %v1972, %v1971
    %v1988 = vpack.c.b16 %v1974, %v1973
    %v1989 = vpack.c.b16 %v1976, %v1975
    %v1990 = vpack.c.b16 %v1978, %v1977
    %v1991 = vpack.c.b16 %v1980, %v1979
    %v1992 = vpack.c.b16 %v1982, %v1981
    %v1993 = vpack.c.b16 %v1984, %v1983
    %v1994 = vpack.c.b16 %v1986, %v1985
    %2003 = vmatprep.subr.bf16.mxu0 0
    %2004 = vmatpush1.bf16.msra.mxu0 %v1987
    %2005 = vmatprep.subr.bf16.mxu0 0
    %2006 = vmatpush1.bf16.msra.mxu0 %v1988
    %2007 = vmatprep.subr.bf16.mxu0 0
    %2008 = vmatpush1.bf16.msra.mxu0 %v1989
    %2009 = vmatprep.subr.bf16.mxu0 0
    %2010 = vmatpush1.bf16.msra.mxu0 %v1990
    %2011 = vmatprep.subr.bf16.mxu0 0
    %2012 = vmatpush1.bf16.msra.mxu0 %v1991
    %2013 = vmatprep.subr.bf16.mxu0 0
    %2014 = vmatpush1.bf16.msra.mxu0 %v1992
    %2015 = vmatprep.subr.bf16.mxu0 0
    %2016 = vmatpush1.bf16.msra.mxu0 %v1993
    %2017 = vmatprep.subr.bf16.mxu0 0
    %2018 = vmatpush1.bf16.msra.mxu0 %v1994
    %2019 = vmatprep.subr.bf16.mxu0 0
    %2020 = vmatpush1.bf16.msra.mxu0 0
    %2021 = vmatprep.subr.bf16.mxu0 0
    %2022 = vmatpush1.bf16.msra.mxu0 0
    %2023 = vmatprep.subr.bf16.mxu0 0
    %2024 = vmatpush1.bf16.msra.mxu0 0
    %2025 = vmatprep.subr.bf16.mxu0 0
    %2026 = vmatpush1.bf16.msra.mxu0 0
    %2027 = vmatprep.subr.bf16.mxu0 0
    %2028 = vmatpush1.bf16.msra.mxu0 0
    %2029 = vmatprep.subr.bf16.mxu0 0
    %2030 = vmatpush1.bf16.msra.mxu0 0
    %2031 = vmatprep.subr.bf16.mxu0 0
    %2032 = vmatpush1.bf16.msra.mxu0 0
    %2033 = vmatprep.subr.bf16.mxu0 0
    %2034 = vmatpush1.bf16.msra.mxu0 0
    %2035 = vmatprep.mubr.bf16.mxu0 0
    %2036 = vmatmul.mubr.bf16.gmra.mrb[0].mxu0 %v1946
    %v2037 = vpop.f32.mrb[0].mxu0
    %v2038 = vadd.f32 %v1953, %v2037
    %v2039 = vpop.f32.mrb[0].mxu0
    %v2040 = vpop.f32.mrb[0].mxu0
    %v2041 = vpop.f32.mrb[0].mxu0
    %2042 = vdwg.mxu0
    %v2043 = vadd.f32 %v1793, %v2038
    %v2044 = vld [vmem:[%s16] sm:$0x1]
    %v2045 = vld [vmem:[%s17] sm:$0x1]
    %v2046 = vsel %vm605, %v2043, 0.0
    %2047 = vadd.xlane.f32.xlu0 %v2046
    %v2048 = vpop.xlane.xlu0 %2047
    %v2049 = vmul.f32 %v2048, %v644
    %v2050 = vsub.f32 %v2043, %v2049
    %v2051 = vmul.f32 %v2050, %v2050
    %v2052 = vsel %vm605, %v2051, 0.0
    %2053 = vadd.xlane.f32.xlu0 %v2052
    %v2054 = vpop.xlane.xlu0 %2053
    %v2055 = vmul.f32 %v2054, %v644
    %v2056 = vadd.f32 %v2055, 1e-12
    %v2057 = vrsqrt.pop %v2056
    %v2058 = vmul.f32 %v2050, %v2057
    %v2060 = vlaneseq
    %v2061 = vshrl.u32 %v2060, 7
    %v2062 = vsub.s32 0, %v2061
    %v2063 = vrot.slane %v2044, %v2062
    %v2065 = vmul.f32 %v2058, %v2063
    %v2067 = vlaneseq
    %v2068 = vshrl.u32 %v2067, 7
    %v2069 = vsub.s32 0, %v2068
    %v2070 = vrot.slane %v2045, %v2069
    %v2072 = vadd.f32 %v2065, %v2070
    %v2073 = vld [vmem:[%s18] sm:$0xf]
    %v2074 = vld [vmem:[%s18 + $0x4] sm:$0xf]
    %v2075 = vld [vmem:[%s18 + $0x8] sm:$0xf]
    %v2076 = vld [vmem:[%s18 + $0xc] sm:$0xf]
    %v2077 = vpack.c.bf16 %v2072, %v2072
    %v2078 = vld [vmem:[%s19] sm:$0x1]
    %v2080 = vlaneseq
    %v2081 = vshrl.u32 %v2080, 7
    %v2082 = vsub.s32 0, %v2081
    %v2083 = vrot.slane %v2078, %v2082
    %v2089 = vunpack.c.l.b16 %v2073
    %v2090 = vunpack.c.l.b16 %v2074
    %v2091 = vunpack.c.l.b16 %v2075
    %v2092 = vunpack.c.l.b16 %v2076
    %v2093 = vpack.c.b16 %v2090, %v2089
    %v2094 = vpack.c.b16 %v2092, %v2091
    %v2098 = vsel %vm605, %v2077, 0
    %2100 = vmatprep.subr.bf16.mxu0 0
    %2101 = vmatpush1.bf16.msra.mxu0 %v2093
    %2102 = vmatprep.subr.bf16.mxu0 0
    %2103 = vmatpush1.bf16.msra.mxu0 %v2094
    %2104 = vmatprep.subr.bf16.mxu0 0
    %2105 = vmatpush1.bf16.msra.mxu0 0
    %2106 = vmatprep.subr.bf16.mxu0 0
    %2107 = vmatpush1.bf16.msra.mxu0 0
    %2108 = vmatprep.subr.bf16.mxu0 0
    %2109 = vmatpush1.bf16.msra.mxu0 0
    %2110 = vmatprep.subr.bf16.mxu0 0
    %2111 = vmatpush1.bf16.msra.mxu0 0
    %2112 = vmatprep.subr.bf16.mxu0 0
    %2113 = vmatpush1.bf16.msra.mxu0 0
    %2114 = vmatprep.subr.bf16.mxu0 0
    %2115 = vmatpush1.bf16.msra.mxu0 0
    %2116 = vmatprep.subr.bf16.mxu0 0
    %2117 = vmatpush1.bf16.msra.mxu0 0
    %2118 = vmatprep.subr.bf16.mxu0 0
    %2119 = vmatpush1.bf16.msra.mxu0 0
    %2120 = vmatprep.subr.bf16.mxu0 0
    %2121 = vmatpush1.bf16.msra.mxu0 0
    %2122 = vmatprep.subr.bf16.mxu0 0
    %2123 = vmatpush1.bf16.msra.mxu0 0
    %2124 = vmatprep.subr.bf16.mxu0 0
    %2125 = vmatpush1.bf16.msra.mxu0 0
    %2126 = vmatprep.subr.bf16.mxu0 0
    %2127 = vmatpush1.bf16.msra.mxu0 0
    %2128 = vmatprep.subr.bf16.mxu0 0
    %2129 = vmatpush1.bf16.msra.mxu0 0
    %2130 = vmatprep.subr.bf16.mxu0 0
    %2131 = vmatpush1.bf16.msra.mxu0 0
    %2132 = vmatprep.mubr.bf16.mxu0 0
    %2133 = vmatmul.mubr.bf16.gmra.mrb[0].mxu0 %v2098
    %v2134 = vpop.f32.mrb[0].mxu0
    %v2135 = vadd.f32 %v2083, %v2134
    %v2136 = vpop.f32.mrb[0].mxu0
    %v2137 = vpop.f32.mrb[0].mxu0
    %v2138 = vpop.f32.mrb[0].mxu0
    %2139 = vdwg.mxu0
    %2140 = vst [vmem:[#allocation3] sm:$0x3] %v2135
    // Predicated region
    $region82: #{vit_forward.1} parent=1 // pred_check
      _
    $region83: #{vit_forward.1} parent=1 // pred_check_branch
      %2142 = sbr.rel (0) target = $region85
    $region84: #{vit_forward.1} parent=1 // pred_region
      %s2144 = ssub.s32 32, 32
      %2145 = vsyncadd [#allocation4], %s2144
      %s2147 = sshll.u32 [#allocation3], 4
      %s2148 = int_to_ptr.vmem [resolvable:$true] %s2147
      %2150 = dma.vmem_to_hbm [thread:$0]  %s2148, 32, %s20, [#allocation4]
    $region85: #{vit_forward.1} parent=1 // pred_fallthru
      _
    // Predicated region
    $region86: #{vit_forward.1} parent=1 // pred_check
      _
    $region87: #{vit_forward.1} parent=1 // pred_check_branch
      %2152 = sbr.rel (0) target = $region89
    $region88: #{vit_forward.1} parent=1 // pred_region
      %2153 = dma.done [#allocation4], 32
    $region89: #{vit_forward.1} parent=1 // pred_fallthru
      _
    %2154 = vsyncpa [#allocation4], 1

</llo_original>
